<compile_context>
chip_gen: v7x
topology: tpu7x:2x2x1
jax: 0.10.0
libtpu: 0.0.40
codegen_flags: <defaults>
</compile_context>

<pallas_src>
import functools

import numpy as np
import jax
import jax.numpy as jnp
from jax import lax
from jax.experimental import pallas as pl
from jax.experimental.pallas import tpu as pltpu

H = 16                 # LSTM hidden size (nn.LSTM(1, 16))
K = 20                 # mixture components
G = 4 * H              # 64: gate width (i, f, o, g after permutation)
NOUT = 3 * K           # 60: Linear(16, 3K) output width
NPAD = 128             # lane-dense fused row: [h@W_hh (64) | h@W_out (60) | pad (4)]

# Column permutation taking PyTorch gate order (i, f, g, o) -> (i, f, o, g) so
# the fused tanh / recovered sigmoids cover contiguous slices.
_GATE_PERM = np.concatenate(
    [np.arange(0, 2 * H), np.arange(3 * H, 4 * H), np.arange(2 * H, 3 * H)])

# 0.5 scale on the i/f/o gate columns only (sigmoid(x) = 0.5*(1 + tanh(x/2))).
_GATE_SCALE = np.ones((G,), np.float32)
_GATE_SCALE[:3 * H] = 0.5


def _lstm_gmm_kernel(x_ref, h0_ref, c0_ref, w_ih_ref, b_ref, w_cat_ref,
                     b_cat_ref, out_ref, h_out_ref, c_out_ref,
                     h_scr, c_scr, xw_scr, *, seq_len, chunk_steps, unroll):
    chunk = pl.program_id(1)

    # Load the initial recurrent state once per batch block (chunk axis is the
    # inner, "arbitrary" grid axis, so chunk==0 marks the start of each block's
    # recurrence).
    @pl.when(chunk == 0)
    def _():
        h_scr[...] = h0_ref[...]
        c_scr[...] = c0_ref[...]

    # Hoisted input projection for the whole chunk (parallel over TC*B):
    #   xw[t] = x_t * (0.5-scaled W_ih^T) + (0.5-scaled biases)   -> (TC, B, 4H)
    xw_scr[...] = x_ref[...] * w_ih_ref[...] + b_ref[...]

    # Invariants hoisted out of the unrolled recurrence (no per-step reload /
    # re-broadcast: JAX does not CSE broadcast_in_dim).
    w_cat = w_cat_ref[...]                                    # (H, 128)
    b_cat = jnp.broadcast_to(b_cat_ref[...], out_ref.shape[1:])  # (B, 128)

    h = h_scr[...]                                            # (B, H)
    c = c_scr[...]                                            # (B, H)
    # Fused projection of the carried state: r = h @ [0.5*W_hh | W_out | 0].
    r = jnp.dot(h, w_cat, preferred_element_type=jnp.float32)  # (B, 128)

    base_t = chunk * chunk_steps

    def step(s, carry):
        _h_prev, c_prev, r_prev = carry                       # gates need only r_prev
        gates = xw_scr[s] + r_prev[:, :G]                     # (B, 4H): [i/2, f/2, o/2, g]
        # Single EUP dispatch over all 64 gate lanes.
        t = jnp.tanh(gates)
        sig = 0.5 * t[:, 0:3 * H] + 0.5                       # i, f, o via one VPU fma
        i_g = sig[:, 0:H]
        f_g = sig[:, H:2 * H]
        o_g = sig[:, 2 * H:3 * H]
        g_g = t[:, 3 * H:4 * H]
        c_t = f_g * c_prev + i_g * g_g
        h_t = o_g * jnp.tanh(c_t)

        # Single MXU matmul per step: next-step gate projection AND this step's
        # output projection, stored as one full-128-lane row (lane-dense store).
        r_t = jnp.dot(h_t, w_cat, preferred_element_type=jnp.float32)
        out_ref[s] = r_t + b_cat

        # Final (h_n, c_n): written exactly once, at the true last timestep
        # (padded tail steps of the last chunk never hit this).
        @pl.when(base_t + s == seq_len - 1)
        def _():
            h_out_ref[...] = h_t
            c_out_ref[...] = c_t

        return h_t, c_t, r_t

    h, c, _ = lax.fori_loop(0, chunk_steps, step, (h, c, r), unroll=unroll)

    # Carry the recurrent state to the next chunk.
    h_scr[...] = h
    c_scr[...] = c


def gaussian_mixture_rnn_forward(x, params, hidden=None, *, chunk_steps=512,
                                 batch_block=None):
    """Semantics of GaussianMixtureRNN.forward: returns [mu, logvar, weights, (h_n, c_n)].

    x: (B, T, 1) float32 (batch_first=True, as in the PyTorch module).
    mu, logvar, weights: (B, T, K).  h_n, c_n: (1, B, H).

    batch_block: None -> single batch block (best on 1-TC v5e/v6e).
                 On v7x with B >= 16 pass e.g. 8 to shard the independent
                 per-batch recurrences across the 2 TensorCores (the leading
                 grid axis is marked "parallel").
    """
    w_ih, w_hh, b_ih, b_hh, w_out, b_out = params
    B, T, _ = x.shape

    if batch_block is None:
        BB = ((B + 7) // 8) * 8                  # one block covering the batch
    else:
        BB = ((min(max(batch_block, 1), B) + 7) // 8) * 8
    num_b_blocks = -(-B // BB)
    Bp = num_b_blocks * BB                       # padded batch (full sublanes)

    TC = max(1, min(chunk_steps, T))             # timesteps per grid step
    num_chunks = -(-T // TC)
    Tp = num_chunks * TC                         # padded sequence length

    # ---- weight preparation (gate permutation + 0.5 scale + fusion), once ----
    scale = jnp.asarray(_GATE_SCALE)
    w_ih_p = jnp.asarray(w_ih, jnp.float32).T[:, _GATE_PERM] * scale[None, :]   # (1, 4H)
    w_hh_p = jnp.asarray(w_hh, jnp.float32).T[:, _GATE_PERM] * scale[None, :]   # (H, 4H)
    b_p = ((jnp.asarray(b_ih, jnp.float32)
            + jnp.asarray(b_hh, jnp.float32))[_GATE_PERM] * scale)[None, :]     # (1, 4H)
    w_cat = jnp.concatenate(
        [w_hh_p, jnp.asarray(w_out, jnp.float32).T,
         jnp.zeros((H, NPAD - G - NOUT), jnp.float32)], axis=1)                 # (H, 128)
    b_cat = jnp.concatenate(
        [jnp.zeros((G,), jnp.float32), jnp.asarray(b_out, jnp.float32),
         jnp.zeros((NPAD - G - NOUT,), jnp.float32)])[None, :]                  # (1, 128)

    # ---- input / state padding (time-major, padded batch & sequence) ----
    x_tm = jnp.transpose(jnp.asarray(x, jnp.float32), (1, 0, 2))                # (T, B, 1)
    x_pad = jnp.zeros((Tp, Bp, 1), jnp.float32).at[:T, :B].set(x_tm)

    if hidden is None:
        h0 = jnp.zeros((Bp, H), jnp.float32)
        c0 = jnp.zeros((Bp, H), jnp.float32)
    else:
        h0 = jnp.zeros((Bp, H), jnp.float32).at[:B].set(
            jnp.asarray(hidden[0], jnp.float32).reshape(B, H))
        c0 = jnp.zeros((Bp, H), jnp.float32).at[:B].set(
            jnp.asarray(hidden[1], jnp.float32).reshape(B, H))

    kernel = functools.partial(
        _lstm_gmm_kernel, seq_len=T, chunk_steps=TC, unroll=min(32, TC))

    out_shapes = (
        jax.ShapeDtypeStruct((Tp, Bp, NPAD), jnp.float32),   # fused per-step rows
        jax.ShapeDtypeStruct((Bp, H), jnp.float32),          # h_n
        jax.ShapeDtypeStruct((Bp, H), jnp.float32),          # c_n
    )
    in_specs = [
        pl.BlockSpec((TC, BB, 1), lambda b, c: (c, b, 0)),   # x chunk (per batch block)
        pl.BlockSpec((BB, H), lambda b, c: (b, 0)),          # h0
        pl.BlockSpec((BB, H), lambda b, c: (b, 0)),          # c0
        pl.BlockSpec((1, G), lambda b, c: (0, 0)),           # 0.5-scaled W_ih^T (permuted)
        pl.BlockSpec((1, G), lambda b, c: (0, 0)),           # 0.5-scaled b_ih + b_hh
        pl.BlockSpec((H, NPAD), lambda b, c: (0, 0)),        # [0.5*W_hh^T | W_out^T | 0]
        pl.BlockSpec((1, NPAD), lambda b, c: (0, 0)),        # [0 | b_out | 0]
    ]
    out_specs = (
        pl.BlockSpec((TC, BB, NPAD), lambda b, c: (c, b, 0)),
        pl.BlockSpec((BB, H), lambda b, c: (b, 0)),
        pl.BlockSpec((BB, H), lambda b, c: (b, 0)),
    )
    scratch_shapes = [
        pltpu.VMEM((BB, H), jnp.float32),        # h carry across chunks
        pltpu.VMEM((BB, H), jnp.float32),        # c carry across chunks
        pltpu.VMEM((TC, BB, G), jnp.float32),    # hoisted input projection
    ]

    slab, h_last, c_last = pl.pallas_call(
        kernel,
        out_shape=out_shapes,
        grid_spec=pltpu.PrefetchScalarGridSpec(
            num_scalar_prefetch=0,
            grid=(num_b_blocks, num_chunks),
            in_specs=in_specs,
            out_specs=out_specs,
            scratch_shapes=scratch_shapes,
        ),
        compiler_params=pltpu.CompilerParams(
            # batch blocks are independent recurrences (v7x megacore);
            # time chunks are strictly serial.
            dimension_semantics=("parallel", "arbitrary"),
            vmem_limit_bytes=32 * 1024 * 1024,
        ),
    )(x_pad, h0, c0, w_ih_p, b_p, w_cat, b_cat)

    logits = jnp.transpose(slab[:T, :B, G:G + NOUT], (1, 0, 2))        # (B, T, 3K)
    mu = logits[..., 0 * K:1 * K]
    logvar = logits[..., 1 * K:2 * K]
    weights = logits[..., 2 * K:3 * K]
    h_n = h_last[:B][None]                                             # (1, B, H)
    c_n = c_last[:B][None]
    return [mu, logvar, weights, (h_n, c_n)]


def init_params(key):
    """Deterministic init matching PyTorch shapes: LSTM(1,16) and Linear(16, 3K)."""
    k1, k2, k3, k4, k5, k6 = jax.random.split(key, 6)
    bound = 1.0 / jnp.sqrt(jnp.float32(H))
    u = lambda k, shape: jax.random.uniform(k, shape, jnp.float32, -bound, bound)
    w_ih = u(k1, (4 * H, 1))        # weight_ih_l0
    w_hh = u(k2, (4 * H, H))        # weight_hh_l0
    b_ih = u(k3, (4 * H,))          # bias_ih_l0
    b_hh = u(k4, (4 * H,))          # bias_hh_l0
    w_out = u(k5, (3 * K, H))       # Linear weight
    b_out = u(k6, (3 * K,))         # Linear bias
    return (w_ih, w_hh, b_ih, b_hh, w_out, b_out)


def _ref_forward(x, params, hidden=None):
    """Pure-JAX reference (lax.scan LSTM) for correctness checking."""
    w_ih, w_hh, b_ih, b_hh, w_out, b_out = params
    B, T, _ = x.shape
    if hidden is None:
        h0 = jnp.zeros((B, H), jnp.float32)
        c0 = jnp.zeros((B, H), jnp.float32)
    else:
        h0, c0 = hidden[0].reshape(B, H), hidden[1].reshape(B, H)

    def step(carry, x_t):
        h, c = carry
        gates = x_t @ w_ih.T + h @ w_hh.T + b_ih + b_hh
        i = jax.nn.sigmoid(gates[:, 0 * H:1 * H])
        f = jax.nn.sigmoid(gates[:, 1 * H:2 * H])
        g = jnp.tanh(gates[:, 2 * H:3 * H])
        o = jax.nn.sigmoid(gates[:, 3 * H:4 * H])
        c = f * c + i * g
        h = o * jnp.tanh(c)
        return (h, c), h @ w_out.T + b_out

    (h_n, c_n), outs = jax.lax.scan(step, (h0, c0), jnp.transpose(x, (1, 0, 2)))
    logits = jnp.transpose(outs, (1, 0, 2))
    return (logits[..., :K], logits[..., K:2 * K], logits[..., 2 * K:],
            (h_n[None], c_n[None]))


if __name__ == "__main__":
    key = jax.random.PRNGKey(0)
    pkey, xkey, hkey, bkey = jax.random.split(key, 4)
    params = init_params(pkey)

    # Case 1: single chunk, no initial hidden state.
    B, T = 2, 8
    x = jax.random.normal(xkey, (B, T, 1), jnp.float32)
    mu, logvar, weights, (h_n, c_n) = gaussian_mixture_rnn_forward(x, params)
    jax.block_until_ready((mu, logvar, weights, h_n, c_n))

    r_mu, r_logvar, r_weights, (r_h, r_c) = _ref_forward(x, params)
    assert mu.shape == (B, T, K) and logvar.shape == (B, T, K) and weights.shape == (B, T, K)
    assert h_n.shape == (1, B, H) and c_n.shape == (1, B, H)
    for a, b in ((mu, r_mu), (logvar, r_logvar), (weights, r_weights), (h_n, r_h), (c_n, r_c)):
        assert jnp.allclose(a, b, atol=1e-4, rtol=1e-4)

    # Case 2: multi-chunk grid with a ragged final chunk and a provided hidden state.
    T2 = 13
    x2 = jax.random.normal(hkey, (B, T2, 1), jnp.float32)
    k1, k2 = jax.random.split(hkey)
    hid = (0.1 * jax.random.normal(k1, (1, B, H), jnp.float32),
           0.1 * jax.random.normal(k2, (1, B, H), jnp.float32))
    out2 = gaussian_mixture_rnn_forward(x2, params, hidden=hid, chunk_steps=8)
    jax.block_until_ready(out2[0])
    ref2 = _ref_forward(x2, params, hidden=hid)
    for a, b in ((out2[0], ref2[0]), (out2[1], ref2[1]), (out2[2], ref2[2]),
                 (out2[3][0], ref2[3][0]), (out2[3][1], ref2[3][1])):
        assert jnp.allclose(a, b, atol=1e-4, rtol=1e-4)

    # Case 3: batch-blocked ("parallel") leading grid axis + ragged time tail
    # (exercises the v7x two-TensorCore sharding path; serial but correct on
    # single-TC chips).
    B3, T3 = 16, 10
    x3 = jax.random.normal(bkey, (B3, T3, 1), jnp.float32)
    out3 = gaussian_mixture_rnn_forward(x3, params, chunk_steps=4, batch_block=8)
    jax.block_until_ready(out3[0])
    ref3 = _ref_forward(x3, params)
    for a, b in ((out3[0], ref3[0]), (out3[1], ref3[1]), (out3[2], ref3[2]),
                 (out3[3][0], ref3[3][0]), (out3[3][1], ref3[3][1])):
        assert jnp.allclose(a, b, atol=1e-4, rtol=1e-4)

    # TODO(synk): inference() (autoregressive multinomial sampling loop) is not
    # part of forward() and is not implemented here.
    print("KERNEL_OK")
</pallas_src>

<mosaic_0001>
module attributes {stable_mosaic.version = 11 : i64} {
  func.func @_lstm_gmm_kernel(%arg0: i32, %arg1: i32, %arg2: memref<8x8x1xf32, #tpu.memory_space<vmem>>, %arg3: memref<8x16xf32, #tpu.memory_space<vmem>>, %arg4: memref<8x16xf32, #tpu.memory_space<vmem>>, %arg5: memref<1x64xf32, #tpu.memory_space<vmem>>, %arg6: memref<1x64xf32, #tpu.memory_space<vmem>>, %arg7: memref<16x128xf32, #tpu.memory_space<vmem>>, %arg8: memref<1x128xf32, #tpu.memory_space<vmem>>, %arg9: memref<8x8x128xf32, #tpu.memory_space<vmem>>, %arg10: memref<8x16xf32, #tpu.memory_space<vmem>>, %arg11: memref<8x16xf32, #tpu.memory_space<vmem>>, %arg12: memref<8x16xf32, #tpu.memory_space<vmem>>, %arg13: memref<8x16xf32, #tpu.memory_space<vmem>>, %arg14: memref<8x8x64xf32, #tpu.memory_space<vmem>>) attributes {dimension_semantics = [#tpu.dimension_semantics<parallel>, #tpu.dimension_semantics<arbitrary>], iteration_bounds = array<i64: 1, 1>, scalar_prefetch = 0 : i64, scratch_operands = 3 : i64, tpu.core_type = #tpu.core_type<tc>, window_params = [{transform_indices = @transform_0, window_bounds = array<i64: 8, 8, 1>}, {transform_indices = @transform_1, window_bounds = array<i64: 8, 16>}, {transform_indices = @transform_2, window_bounds = array<i64: 8, 16>}, {pipeline_mode = #tpu.pipeline_mode<synchronous>, transform_indices = @transform_3, window_bounds = array<i64: 1, 64>}, {pipeline_mode = #tpu.pipeline_mode<synchronous>, transform_indices = @transform_4, window_bounds = array<i64: 1, 64>}, {pipeline_mode = #tpu.pipeline_mode<synchronous>, transform_indices = @transform_5, window_bounds = array<i64: 16, 128>}, {pipeline_mode = #tpu.pipeline_mode<synchronous>, transform_indices = @transform_6, window_bounds = array<i64: 1, 128>}, {transform_indices = @transform_7, window_bounds = array<i64: 8, 8, 128>}, {transform_indices = @transform_8, window_bounds = array<i64: 8, 16>}, {transform_indices = @transform_9, window_bounds = array<i64: 8, 16>}]} {
    %c0_i32 = arith.constant 0 : i32
    %0 = arith.cmpi eq, %arg1, %c0_i32 : i32
    %1 = arith.extui %0 : i1 to i32
    %c0_i32_0 = arith.constant 0 : i32
    %2 = arith.cmpi ne, %1, %c0_i32_0 : i32
    scf.if %2 {
      %c0_96 = arith.constant 0 : index
      %c0_97 = arith.constant 0 : index
      %264 = vector.load %arg3[%c0_96, %c0_97] : memref<8x16xf32, #tpu.memory_space<vmem>>, vector<8x16xf32>
      %c0_98 = arith.constant 0 : index
      %c0_99 = arith.constant 0 : index
      %265 = vector.load %arg12[%c0_98, %c0_99] : memref<8x16xf32, #tpu.memory_space<vmem>>, vector<8x16xf32>
      tpu.vector_store %arg12[%c0_98, %c0_99], %264 {strides = array<i32>} : memref<8x16xf32, #tpu.memory_space<vmem>>, vector<8x16xf32>,
      %c0_100 = arith.constant 0 : index
      %c0_101 = arith.constant 0 : index
      %266 = vector.load %arg4[%c0_100, %c0_101] : memref<8x16xf32, #tpu.memory_space<vmem>>, vector<8x16xf32>
      %c0_102 = arith.constant 0 : index
      %c0_103 = arith.constant 0 : index
      %267 = vector.load %arg13[%c0_102, %c0_103] : memref<8x16xf32, #tpu.memory_space<vmem>>, vector<8x16xf32>
      tpu.vector_store %arg13[%c0_102, %c0_103], %266 {strides = array<i32>} : memref<8x16xf32, #tpu.memory_space<vmem>>, vector<8x16xf32>,
    } else {
    }
    %c0 = arith.constant 0 : index
    %c0_1 = arith.constant 0 : index
    %c0_2 = arith.constant 0 : index
    %3 = vector.load %arg2[%c0, %c0_1, %c0_2] : memref<8x8x1xf32, #tpu.memory_space<vmem>>, vector<8x8x1xf32>
    %c0_3 = arith.constant 0 : index
    %c0_4 = arith.constant 0 : index
    %4 = vector.load %arg5[%c0_3, %c0_4] : memref<1x64xf32, #tpu.memory_space<vmem>>, vector<1x64xf32>
    %5 = vector.shape_cast %4 : vector<1x64xf32> to vector<1x1x64xf32>
    %6 = vector.broadcast %3 : vector<8x8x1xf32> to vector<8x8x64xf32>
    %7 = vector.broadcast %5 : vector<1x1x64xf32> to vector<8x8x64xf32>
    %8 = arith.mulf %6, %7 : vector<8x8x64xf32>
    %c0_5 = arith.constant 0 : index
    %c0_6 = arith.constant 0 : index
    %9 = vector.load %arg6[%c0_5, %c0_6] : memref<1x64xf32, #tpu.memory_space<vmem>>, vector<1x64xf32>
    %10 = vector.shape_cast %9 : vector<1x64xf32> to vector<1x1x64xf32>
    %11 = vector.broadcast %10 : vector<1x1x64xf32> to vector<8x8x64xf32>
    %12 = arith.addf %8, %11 : vector<8x8x64xf32>
    %c0_7 = arith.constant 0 : index
    %c0_8 = arith.constant 0 : index
    %c0_9 = arith.constant 0 : index
    %13 = vector.load %arg14[%c0_7, %c0_8, %c0_9] : memref<8x8x64xf32, #tpu.memory_space<vmem>>, vector<8x8x64xf32>
    tpu.vector_store %arg14[%c0_7, %c0_8, %c0_9], %12 {strides = array<i32>} : memref<8x8x64xf32, #tpu.memory_space<vmem>>, vector<8x8x64xf32>,
    %c0_10 = arith.constant 0 : index
    %c0_11 = arith.constant 0 : index
    %14 = vector.load %arg7[%c0_10, %c0_11] : memref<16x128xf32, #tpu.memory_space<vmem>>, vector<16x128xf32>
    %c0_12 = arith.constant 0 : index
    %c0_13 = arith.constant 0 : index
    %15 = vector.load %arg8[%c0_12, %c0_13] : memref<1x128xf32, #tpu.memory_space<vmem>>, vector<1x128xf32>
    %16 = vector.shape_cast %15 : vector<1x128xf32> to vector<1x128xf32>
    %17 = vector.broadcast %16 : vector<1x128xf32> to vector<8x128xf32>
    %c0_14 = arith.constant 0 : index
    %c0_15 = arith.constant 0 : index
    %18 = vector.load %arg12[%c0_14, %c0_15] : memref<8x16xf32, #tpu.memory_space<vmem>>, vector<8x16xf32>
    %c0_16 = arith.constant 0 : index
    %c0_17 = arith.constant 0 : index
    %19 = vector.load %arg13[%c0_16, %c0_17] : memref<8x16xf32, #tpu.memory_space<vmem>>, vector<8x16xf32>
    %cst = arith.constant dense<0.000000e+00> : vector<8x128xf32>
    %20 = tpu.matmul %18, %14, %cst {dimension_numbers = #tpu.dot_dimension_numbers<[1], [0], [0], [1], [0, 0, 1, 1], [], []>} : vector<8x16xf32>, vector<16x128xf32>, vector<8x128xf32> -> vector<8x128xf32>
    %c8_i32 = arith.constant 8 : i32
    %21 = arith.muli %arg1, %c8_i32 : i32
    %c0_i32_18 = arith.constant 0 : i32
    %22 = arith.index_cast %c0_i32_18 : i32 to index
    %c0_19 = arith.constant 0 : index
    %c0_20 = arith.constant 0 : index
    %23 = vector.load %arg14[%22, %c0_19, %c0_20] : memref<8x8x64xf32, #tpu.memory_space<vmem>>, vector<1x8x64xf32>
    %24 = vector.shape_cast %23 : vector<1x8x64xf32> to vector<8x64xf32>
    %25 = vector.extract_strided_slice %20 {offsets = [0, 0], sizes = [8, 64], strides = [1, 1]} : vector<8x128xf32> to vector<8x64xf32>
    %26 = arith.addf %24, %25 : vector<8x64xf32>
    %27 = math.tanh %26 : vector<8x64xf32>
    %28 = vector.extract_strided_slice %27 {offsets = [0, 0], sizes = [8, 48], strides = [1, 1]} : vector<8x64xf32> to vector<8x48xf32>
    %cst_21 = arith.constant 5.000000e-01 : f32
    %29 = vector.broadcast %cst_21 : f32 to vector<8x48xf32>
    %30 = arith.mulf %29, %28 : vector<8x48xf32>
    %cst_22 = arith.constant 5.000000e-01 : f32
    %31 = vector.broadcast %cst_22 : f32 to vector<8x48xf32>
    %32 = arith.addf %30, %31 : vector<8x48xf32>
    %33 = vector.extract_strided_slice %32 {offsets = [0, 0], sizes = [8, 16], strides = [1, 1]} : vector<8x48xf32> to vector<8x16xf32>
    %34 = vector.extract_strided_slice %32 {offsets = [0, 16], sizes = [8, 16], strides = [1, 1]} : vector<8x48xf32> to vector<8x16xf32>
    %35 = vector.extract_strided_slice %32 {offsets = [0, 32], sizes = [8, 16], strides = [1, 1]} : vector<8x48xf32> to vector<8x16xf32>
    %36 = vector.extract_strided_slice %27 {offsets = [0, 48], sizes = [8, 16], strides = [1, 1]} : vector<8x64xf32> to vector<8x16xf32>
    %37 = arith.mulf %34, %19 : vector<8x16xf32>
    %38 = arith.mulf %33, %36 : vector<8x16xf32>
    %39 = arith.addf %37, %38 : vector<8x16xf32>
    %40 = math.tanh %39 : vector<8x16xf32>
    %41 = arith.mulf %35, %40 : vector<8x16xf32>
    %cst_23 = arith.constant dense<0.000000e+00> : vector<8x128xf32>
    %42 = tpu.matmul %41, %14, %cst_23 {dimension_numbers = #tpu.dot_dimension_numbers<[1], [0], [0], [1], [0, 0, 1, 1], [], []>} : vector<8x16xf32>, vector<16x128xf32>, vector<8x128xf32> -> vector<8x128xf32>
    %43 = arith.addf %42, %17 : vector<8x128xf32>
    %44 = arith.index_cast %c0_i32_18 : i32 to index
    %c0_24 = arith.constant 0 : index
    %c0_25 = arith.constant 0 : index
    %45 = vector.load %arg9[%44, %c0_24, %c0_25] : memref<8x8x128xf32, #tpu.memory_space<vmem>>, vector<1x8x128xf32>
    %46 = vector.shape_cast %45 : vector<1x8x128xf32> to vector<8x128xf32>
    %47 = vector.shape_cast %43 : vector<8x128xf32> to vector<1x8x128xf32>
    tpu.vector_store %arg9[%44, %c0_24, %c0_25], %47 {strides = array<i32>} : memref<8x8x128xf32, #tpu.memory_space<vmem>>, vector<1x8x128xf32>,
    %48 = arith.addi %21, %c0_i32_18 : i32
    %c7_i32 = arith.constant 7 : i32
    %49 = arith.cmpi eq, %48, %c7_i32 : i32
    %50 = arith.extui %49 : i1 to i32
    %c0_i32_26 = arith.constant 0 : i32
    %51 = arith.cmpi ne, %50, %c0_i32_26 : i32
    scf.if %51 {
      %c0_96 = arith.constant 0 : index
      %c0_97 = arith.constant 0 : index
      %264 = vector.load %arg10[%c0_96, %c0_97] : memref<8x16xf32, #tpu.memory_space<vmem>>, vector<8x16xf32>
      tpu.vector_store %arg10[%c0_96, %c0_97], %41 {strides = array<i32>} : memref<8x16xf32, #tpu.memory_space<vmem>>, vector<8x16xf32>,
      %c0_98 = arith.constant 0 : index
      %c0_99 = arith.constant 0 : index
      %265 = vector.load %arg11[%c0_98, %c0_99] : memref<8x16xf32, #tpu.memory_space<vmem>>, vector<8x16xf32>
      tpu.vector_store %arg11[%c0_98, %c0_99], %39 {strides = array<i32>} : memref<8x16xf32, #tpu.memory_space<vmem>>, vector<8x16xf32>,
    } else {
    }
    %c1_i32 = arith.constant 1 : i32
    %52 = arith.index_cast %c1_i32 : i32 to index
    %c0_27 = arith.constant 0 : index
    %c0_28 = arith.constant 0 : index
    %53 = vector.load %arg14[%52, %c0_27, %c0_28] : memref<8x8x64xf32, #tpu.memory_space<vmem>>, vector<1x8x64xf32>
    %54 = vector.shape_cast %53 : vector<1x8x64xf32> to vector<8x64xf32>
    %55 = vector.extract_strided_slice %42 {offsets = [0, 0], sizes = [8, 64], strides = [1, 1]} : vector<8x128xf32> to vector<8x64xf32>
    %56 = arith.addf %54, %55 : vector<8x64xf32>
    %57 = math.tanh %56 : vector<8x64xf32>
    %58 = vector.extract_strided_slice %57 {offsets = [0, 0], sizes = [8, 48], strides = [1, 1]} : vector<8x64xf32> to vector<8x48xf32>
    %cst_29 = arith.constant 5.000000e-01 : f32
    %59 = vector.broadcast %cst_29 : f32 to vector<8x48xf32>
    %60 = arith.mulf %59, %58 : vector<8x48xf32>
    %cst_30 = arith.constant 5.000000e-01 : f32
    %61 = vector.broadcast %cst_30 : f32 to vector<8x48xf32>
    %62 = arith.addf %60, %61 : vector<8x48xf32>
    %63 = vector.extract_strided_slice %62 {offsets = [0, 0], sizes = [8, 16], strides = [1, 1]} : vector<8x48xf32> to vector<8x16xf32>
    %64 = vector.extract_strided_slice %62 {offsets = [0, 16], sizes = [8, 16], strides = [1, 1]} : vector<8x48xf32> to vector<8x16xf32>
    %65 = vector.extract_strided_slice %62 {offsets = [0, 32], sizes = [8, 16], strides = [1, 1]} : vector<8x48xf32> to vector<8x16xf32>
    %66 = vector.extract_strided_slice %57 {offsets = [0, 48], sizes = [8, 16], strides = [1, 1]} : vector<8x64xf32> to vector<8x16xf32>
    %67 = arith.mulf %64, %39 : vector<8x16xf32>
    %68 = arith.mulf %63, %66 : vector<8x16xf32>
    %69 = arith.addf %67, %68 : vector<8x16xf32>
    %70 = math.tanh %69 : vector<8x16xf32>
    %71 = arith.mulf %65, %70 : vector<8x16xf32>
    %cst_31 = arith.constant dense<0.000000e+00> : vector<8x128xf32>
    %72 = tpu.matmul %71, %14, %cst_31 {dimension_numbers = #tpu.dot_dimension_numbers<[1], [0], [0], [1], [0, 0, 1, 1], [], []>} : vector<8x16xf32>, vector<16x128xf32>, vector<8x128xf32> -> vector<8x128xf32>
    %73 = arith.addf %72, %17 : vector<8x128xf32>
    %74 = arith.index_cast %c1_i32 : i32 to index
    %c0_32 = arith.constant 0 : index
    %c0_33 = arith.constant 0 : index
    %75 = vector.load %arg9[%74, %c0_32, %c0_33] : memref<8x8x128xf32, #tpu.memory_space<vmem>>, vector<1x8x128xf32>
    %76 = vector.shape_cast %75 : vector<1x8x128xf32> to vector<8x128xf32>
    %77 = vector.shape_cast %73 : vector<8x128xf32> to vector<1x8x128xf32>
    tpu.vector_store %arg9[%74, %c0_32, %c0_33], %77 {strides = array<i32>} : memref<8x8x128xf32, #tpu.memory_space<vmem>>, vector<1x8x128xf32>,
    %78 = arith.addi %21, %c1_i32 : i32
    %c7_i32_34 = arith.constant 7 : i32
    %79 = arith.cmpi eq, %78, %c7_i32_34 : i32
    %80 = arith.extui %79 : i1 to i32
    %c0_i32_35 = arith.constant 0 : i32
    %81 = arith.cmpi ne, %80, %c0_i32_35 : i32
    scf.if %81 {
      %c0_96 = arith.constant 0 : index
      %c0_97 = arith.constant 0 : index
      %264 = vector.load %arg10[%c0_96, %c0_97] : memref<8x16xf32, #tpu.memory_space<vmem>>, vector<8x16xf32>
      tpu.vector_store %arg10[%c0_96, %c0_97], %71 {strides = array<i32>} : memref<8x16xf32, #tpu.memory_space<vmem>>, vector<8x16xf32>,
      %c0_98 = arith.constant 0 : index
      %c0_99 = arith.constant 0 : index
      %265 = vector.load %arg11[%c0_98, %c0_99] : memref<8x16xf32, #tpu.memory_space<vmem>>, vector<8x16xf32>
      tpu.vector_store %arg11[%c0_98, %c0_99], %69 {strides = array<i32>} : memref<8x16xf32, #tpu.memory_space<vmem>>, vector<8x16xf32>,
    } else {
    }
    %c2_i32 = arith.constant 2 : i32
    %82 = arith.index_cast %c2_i32 : i32 to index
    %c0_36 = arith.constant 0 : index
    %c0_37 = arith.constant 0 : index
    %83 = vector.load %arg14[%82, %c0_36, %c0_37] : memref<8x8x64xf32, #tpu.memory_space<vmem>>, vector<1x8x64xf32>
    %84 = vector.shape_cast %83 : vector<1x8x64xf32> to vector<8x64xf32>
    %85 = vector.extract_strided_slice %72 {offsets = [0, 0], sizes = [8, 64], strides = [1, 1]} : vector<8x128xf32> to vector<8x64xf32>
    %86 = arith.addf %84, %85 : vector<8x64xf32>
    %87 = math.tanh %86 : vector<8x64xf32>
    %88 = vector.extract_strided_slice %87 {offsets = [0, 0], sizes = [8, 48], strides = [1, 1]} : vector<8x64xf32> to vector<8x48xf32>
    %cst_38 = arith.constant 5.000000e-01 : f32
    %89 = vector.broadcast %cst_38 : f32 to vector<8x48xf32>
    %90 = arith.mulf %89, %88 : vector<8x48xf32>
    %cst_39 = arith.constant 5.000000e-01 : f32
    %91 = vector.broadcast %cst_39 : f32 to vector<8x48xf32>
    %92 = arith.addf %90, %91 : vector<8x48xf32>
    %93 = vector.extract_strided_slice %92 {offsets = [0, 0], sizes = [8, 16], strides = [1, 1]} : vector<8x48xf32> to vector<8x16xf32>
    %94 = vector.extract_strided_slice %92 {offsets = [0, 16], sizes = [8, 16], strides = [1, 1]} : vector<8x48xf32> to vector<8x16xf32>
    %95 = vector.extract_strided_slice %92 {offsets = [0, 32], sizes = [8, 16], strides = [1, 1]} : vector<8x48xf32> to vector<8x16xf32>
    %96 = vector.extract_strided_slice %87 {offsets = [0, 48], sizes = [8, 16], strides = [1, 1]} : vector<8x64xf32> to vector<8x16xf32>
    %97 = arith.mulf %94, %69 : vector<8x16xf32>
    %98 = arith.mulf %93, %96 : vector<8x16xf32>
    %99 = arith.addf %97, %98 : vector<8x16xf32>
    %100 = math.tanh %99 : vector<8x16xf32>
    %101 = arith.mulf %95, %100 : vector<8x16xf32>
    %cst_40 = arith.constant dense<0.000000e+00> : vector<8x128xf32>
    %102 = tpu.matmul %101, %14, %cst_40 {dimension_numbers = #tpu.dot_dimension_numbers<[1], [0], [0], [1], [0, 0, 1, 1], [], []>} : vector<8x16xf32>, vector<16x128xf32>, vector<8x128xf32> -> vector<8x128xf32>
    %103 = arith.addf %102, %17 : vector<8x128xf32>
    %104 = arith.index_cast %c2_i32 : i32 to index
    %c0_41 = arith.constant 0 : index
    %c0_42 = arith.constant 0 : index
    %105 = vector.load %arg9[%104, %c0_41, %c0_42] : memref<8x8x128xf32, #tpu.memory_space<vmem>>, vector<1x8x128xf32>
    %106 = vector.shape_cast %105 : vector<1x8x128xf32> to vector<8x128xf32>
    %107 = vector.shape_cast %103 : vector<8x128xf32> to vector<1x8x128xf32>
    tpu.vector_store %arg9[%104, %c0_41, %c0_42], %107 {strides = array<i32>} : memref<8x8x128xf32, #tpu.memory_space<vmem>>, vector<1x8x128xf32>,
    %108 = arith.addi %21, %c2_i32 : i32
    %c7_i32_43 = arith.constant 7 : i32
    %109 = arith.cmpi eq, %108, %c7_i32_43 : i32
    %110 = arith.extui %109 : i1 to i32
    %c0_i32_44 = arith.constant 0 : i32
    %111 = arith.cmpi ne, %110, %c0_i32_44 : i32
    scf.if %111 {
      %c0_96 = arith.constant 0 : index
      %c0_97 = arith.constant 0 : index
      %264 = vector.load %arg10[%c0_96, %c0_97] : memref<8x16xf32, #tpu.memory_space<vmem>>, vector<8x16xf32>
      tpu.vector_store %arg10[%c0_96, %c0_97], %101 {strides = array<i32>} : memref<8x16xf32, #tpu.memory_space<vmem>>, vector<8x16xf32>,
      %c0_98 = arith.constant 0 : index
      %c0_99 = arith.constant 0 : index
      %265 = vector.load %arg11[%c0_98, %c0_99] : memref<8x16xf32, #tpu.memory_space<vmem>>, vector<8x16xf32>
      tpu.vector_store %arg11[%c0_98, %c0_99], %99 {strides = array<i32>} : memref<8x16xf32, #tpu.memory_space<vmem>>, vector<8x16xf32>,
    } else {
    }
    %c3_i32 = arith.constant 3 : i32
    %112 = arith.index_cast %c3_i32 : i32 to index
    %c0_45 = arith.constant 0 : index
    %c0_46 = arith.constant 0 : index
    %113 = vector.load %arg14[%112, %c0_45, %c0_46] : memref<8x8x64xf32, #tpu.memory_space<vmem>>, vector<1x8x64xf32>
    %114 = vector.shape_cast %113 : vector<1x8x64xf32> to vector<8x64xf32>
    %115 = vector.extract_strided_slice %102 {offsets = [0, 0], sizes = [8, 64], strides = [1, 1]} : vector<8x128xf32> to vector<8x64xf32>
    %116 = arith.addf %114, %115 : vector<8x64xf32>
    %117 = math.tanh %116 : vector<8x64xf32>
    %118 = vector.extract_strided_slice %117 {offsets = [0, 0], sizes = [8, 48], strides = [1, 1]} : vector<8x64xf32> to vector<8x48xf32>
    %cst_47 = arith.constant 5.000000e-01 : f32
    %119 = vector.broadcast %cst_47 : f32 to vector<8x48xf32>
    %120 = arith.mulf %119, %118 : vector<8x48xf32>
    %cst_48 = arith.constant 5.000000e-01 : f32
    %121 = vector.broadcast %cst_48 : f32 to vector<8x48xf32>
    %122 = arith.addf %120, %121 : vector<8x48xf32>
    %123 = vector.extract_strided_slice %122 {offsets = [0, 0], sizes = [8, 16], strides = [1, 1]} : vector<8x48xf32> to vector<8x16xf32>
    %124 = vector.extract_strided_slice %122 {offsets = [0, 16], sizes = [8, 16], strides = [1, 1]} : vector<8x48xf32> to vector<8x16xf32>
    %125 = vector.extract_strided_slice %122 {offsets = [0, 32], sizes = [8, 16], strides = [1, 1]} : vector<8x48xf32> to vector<8x16xf32>
    %126 = vector.extract_strided_slice %117 {offsets = [0, 48], sizes = [8, 16], strides = [1, 1]} : vector<8x64xf32> to vector<8x16xf32>
    %127 = arith.mulf %124, %99 : vector<8x16xf32>
    %128 = arith.mulf %123, %126 : vector<8x16xf32>
    %129 = arith.addf %127, %128 : vector<8x16xf32>
    %130 = math.tanh %129 : vector<8x16xf32>
    %131 = arith.mulf %125, %130 : vector<8x16xf32>
    %cst_49 = arith.constant dense<0.000000e+00> : vector<8x128xf32>
    %132 = tpu.matmul %131, %14, %cst_49 {dimension_numbers = #tpu.dot_dimension_numbers<[1], [0], [0], [1], [0, 0, 1, 1], [], []>} : vector<8x16xf32>, vector<16x128xf32>, vector<8x128xf32> -> vector<8x128xf32>
    %133 = arith.addf %132, %17 : vector<8x128xf32>
    %134 = arith.index_cast %c3_i32 : i32 to index
    %c0_50 = arith.constant 0 : index
    %c0_51 = arith.constant 0 : index
    %135 = vector.load %arg9[%134, %c0_50, %c0_51] : memref<8x8x128xf32, #tpu.memory_space<vmem>>, vector<1x8x128xf32>
    %136 = vector.shape_cast %135 : vector<1x8x128xf32> to vector<8x128xf32>
    %137 = vector.shape_cast %133 : vector<8x128xf32> to vector<1x8x128xf32>
    tpu.vector_store %arg9[%134, %c0_50, %c0_51], %137 {strides = array<i32>} : memref<8x8x128xf32, #tpu.memory_space<vmem>>, vector<1x8x128xf32>,
    %138 = arith.addi %21, %c3_i32 : i32
    %c7_i32_52 = arith.constant 7 : i32
    %139 = arith.cmpi eq, %138, %c7_i32_52 : i32
    %140 = arith.extui %139 : i1 to i32
    %c0_i32_53 = arith.constant 0 : i32
    %141 = arith.cmpi ne, %140, %c0_i32_53 : i32
    scf.if %141 {
      %c0_96 = arith.constant 0 : index
      %c0_97 = arith.constant 0 : index
      %264 = vector.load %arg10[%c0_96, %c0_97] : memref<8x16xf32, #tpu.memory_space<vmem>>, vector<8x16xf32>
      tpu.vector_store %arg10[%c0_96, %c0_97], %131 {strides = array<i32>} : memref<8x16xf32, #tpu.memory_space<vmem>>, vector<8x16xf32>,
      %c0_98 = arith.constant 0 : index
      %c0_99 = arith.constant 0 : index
      %265 = vector.load %arg11[%c0_98, %c0_99] : memref<8x16xf32, #tpu.memory_space<vmem>>, vector<8x16xf32>
      tpu.vector_store %arg11[%c0_98, %c0_99], %129 {strides = array<i32>} : memref<8x16xf32, #tpu.memory_space<vmem>>, vector<8x16xf32>,
    } else {
    }
    %c4_i32 = arith.constant 4 : i32
    %142 = arith.index_cast %c4_i32 : i32 to index
    %c0_54 = arith.constant 0 : index
    %c0_55 = arith.constant 0 : index
    %143 = vector.load %arg14[%142, %c0_54, %c0_55] : memref<8x8x64xf32, #tpu.memory_space<vmem>>, vector<1x8x64xf32>
    %144 = vector.shape_cast %143 : vector<1x8x64xf32> to vector<8x64xf32>
    %145 = vector.extract_strided_slice %132 {offsets = [0, 0], sizes = [8, 64], strides = [1, 1]} : vector<8x128xf32> to vector<8x64xf32>
    %146 = arith.addf %144, %145 : vector<8x64xf32>
    %147 = math.tanh %146 : vector<8x64xf32>
    %148 = vector.extract_strided_slice %147 {offsets = [0, 0], sizes = [8, 48], strides = [1, 1]} : vector<8x64xf32> to vector<8x48xf32>
    %cst_56 = arith.constant 5.000000e-01 : f32
    %149 = vector.broadcast %cst_56 : f32 to vector<8x48xf32>
    %150 = arith.mulf %149, %148 : vector<8x48xf32>
    %cst_57 = arith.constant 5.000000e-01 : f32
    %151 = vector.broadcast %cst_57 : f32 to vector<8x48xf32>
    %152 = arith.addf %150, %151 : vector<8x48xf32>
    %153 = vector.extract_strided_slice %152 {offsets = [0, 0], sizes = [8, 16], strides = [1, 1]} : vector<8x48xf32> to vector<8x16xf32>
    %154 = vector.extract_strided_slice %152 {offsets = [0, 16], sizes = [8, 16], strides = [1, 1]} : vector<8x48xf32> to vector<8x16xf32>
    %155 = vector.extract_strided_slice %152 {offsets = [0, 32], sizes = [8, 16], strides = [1, 1]} : vector<8x48xf32> to vector<8x16xf32>
    %156 = vector.extract_strided_slice %147 {offsets = [0, 48], sizes = [8, 16], strides = [1, 1]} : vector<8x64xf32> to vector<8x16xf32>
    %157 = arith.mulf %154, %129 : vector<8x16xf32>
    %158 = arith.mulf %153, %156 : vector<8x16xf32>
    %159 = arith.addf %157, %158 : vector<8x16xf32>
    %160 = math.tanh %159 : vector<8x16xf32>
    %161 = arith.mulf %155, %160 : vector<8x16xf32>
    %cst_58 = arith.constant dense<0.000000e+00> : vector<8x128xf32>
    %162 = tpu.matmul %161, %14, %cst_58 {dimension_numbers = #tpu.dot_dimension_numbers<[1], [0], [0], [1], [0, 0, 1, 1], [], []>} : vector<8x16xf32>, vector<16x128xf32>, vector<8x128xf32> -> vector<8x128xf32>
    %163 = arith.addf %162, %17 : vector<8x128xf32>
    %164 = arith.index_cast %c4_i32 : i32 to index
    %c0_59 = arith.constant 0 : index
    %c0_60 = arith.constant 0 : index
    %165 = vector.load %arg9[%164, %c0_59, %c0_60] : memref<8x8x128xf32, #tpu.memory_space<vmem>>, vector<1x8x128xf32>
    %166 = vector.shape_cast %165 : vector<1x8x128xf32> to vector<8x128xf32>
    %167 = vector.shape_cast %163 : vector<8x128xf32> to vector<1x8x128xf32>
    tpu.vector_store %arg9[%164, %c0_59, %c0_60], %167 {strides = array<i32>} : memref<8x8x128xf32, #tpu.memory_space<vmem>>, vector<1x8x128xf32>,
    %168 = arith.addi %21, %c4_i32 : i32
    %c7_i32_61 = arith.constant 7 : i32
    %169 = arith.cmpi eq, %168, %c7_i32_61 : i32
    %170 = arith.extui %169 : i1 to i32
    %c0_i32_62 = arith.constant 0 : i32
    %171 = arith.cmpi ne, %170, %c0_i32_62 : i32
    scf.if %171 {
      %c0_96 = arith.constant 0 : index
      %c0_97 = arith.constant 0 : index
      %264 = vector.load %arg10[%c0_96, %c0_97] : memref<8x16xf32, #tpu.memory_space<vmem>>, vector<8x16xf32>
      tpu.vector_store %arg10[%c0_96, %c0_97], %161 {strides = array<i32>} : memref<8x16xf32, #tpu.memory_space<vmem>>, vector<8x16xf32>,
      %c0_98 = arith.constant 0 : index
      %c0_99 = arith.constant 0 : index
      %265 = vector.load %arg11[%c0_98, %c0_99] : memref<8x16xf32, #tpu.memory_space<vmem>>, vector<8x16xf32>
      tpu.vector_store %arg11[%c0_98, %c0_99], %159 {strides = array<i32>} : memref<8x16xf32, #tpu.memory_space<vmem>>, vector<8x16xf32>,
    } else {
    }
    %c5_i32 = arith.constant 5 : i32
    %172 = arith.index_cast %c5_i32 : i32 to index
    %c0_63 = arith.constant 0 : index
    %c0_64 = arith.constant 0 : index
    %173 = vector.load %arg14[%172, %c0_63, %c0_64] : memref<8x8x64xf32, #tpu.memory_space<vmem>>, vector<1x8x64xf32>
    %174 = vector.shape_cast %173 : vector<1x8x64xf32> to vector<8x64xf32>
    %175 = vector.extract_strided_slice %162 {offsets = [0, 0], sizes = [8, 64], strides = [1, 1]} : vector<8x128xf32> to vector<8x64xf32>
    %176 = arith.addf %174, %175 : vector<8x64xf32>
    %177 = math.tanh %176 : vector<8x64xf32>
    %178 = vector.extract_strided_slice %177 {offsets = [0, 0], sizes = [8, 48], strides = [1, 1]} : vector<8x64xf32> to vector<8x48xf32>
    %cst_65 = arith.constant 5.000000e-01 : f32
    %179 = vector.broadcast %cst_65 : f32 to vector<8x48xf32>
    %180 = arith.mulf %179, %178 : vector<8x48xf32>
    %cst_66 = arith.constant 5.000000e-01 : f32
    %181 = vector.broadcast %cst_66 : f32 to vector<8x48xf32>
    %182 = arith.addf %180, %181 : vector<8x48xf32>
    %183 = vector.extract_strided_slice %182 {offsets = [0, 0], sizes = [8, 16], strides = [1, 1]} : vector<8x48xf32> to vector<8x16xf32>
    %184 = vector.extract_strided_slice %182 {offsets = [0, 16], sizes = [8, 16], strides = [1, 1]} : vector<8x48xf32> to vector<8x16xf32>
    %185 = vector.extract_strided_slice %182 {offsets = [0, 32], sizes = [8, 16], strides = [1, 1]} : vector<8x48xf32> to vector<8x16xf32>
    %186 = vector.extract_strided_slice %177 {offsets = [0, 48], sizes = [8, 16], strides = [1, 1]} : vector<8x64xf32> to vector<8x16xf32>
    %187 = arith.mulf %184, %159 : vector<8x16xf32>
    %188 = arith.mulf %183, %186 : vector<8x16xf32>
    %189 = arith.addf %187, %188 : vector<8x16xf32>
    %190 = math.tanh %189 : vector<8x16xf32>
    %191 = arith.mulf %185, %190 : vector<8x16xf32>
    %cst_67 = arith.constant dense<0.000000e+00> : vector<8x128xf32>
    %192 = tpu.matmul %191, %14, %cst_67 {dimension_numbers = #tpu.dot_dimension_numbers<[1], [0], [0], [1], [0, 0, 1, 1], [], []>} : vector<8x16xf32>, vector<16x128xf32>, vector<8x128xf32> -> vector<8x128xf32>
    %193 = arith.addf %192, %17 : vector<8x128xf32>
    %194 = arith.index_cast %c5_i32 : i32 to index
    %c0_68 = arith.constant 0 : index
    %c0_69 = arith.constant 0 : index
    %195 = vector.load %arg9[%194, %c0_68, %c0_69] : memref<8x8x128xf32, #tpu.memory_space<vmem>>, vector<1x8x128xf32>
    %196 = vector.shape_cast %195 : vector<1x8x128xf32> to vector<8x128xf32>
    %197 = vector.shape_cast %193 : vector<8x128xf32> to vector<1x8x128xf32>
    tpu.vector_store %arg9[%194, %c0_68, %c0_69], %197 {strides = array<i32>} : memref<8x8x128xf32, #tpu.memory_space<vmem>>, vector<1x8x128xf32>,
    %198 = arith.addi %21, %c5_i32 : i32
    %c7_i32_70 = arith.constant 7 : i32
    %199 = arith.cmpi eq, %198, %c7_i32_70 : i32
    %200 = arith.extui %199 : i1 to i32
    %c0_i32_71 = arith.constant 0 : i32
    %201 = arith.cmpi ne, %200, %c0_i32_71 : i32
    scf.if %201 {
      %c0_96 = arith.constant 0 : index
      %c0_97 = arith.constant 0 : index
      %264 = vector.load %arg10[%c0_96, %c0_97] : memref<8x16xf32, #tpu.memory_space<vmem>>, vector<8x16xf32>
      tpu.vector_store %arg10[%c0_96, %c0_97], %191 {strides = array<i32>} : memref<8x16xf32, #tpu.memory_space<vmem>>, vector<8x16xf32>,
      %c0_98 = arith.constant 0 : index
      %c0_99 = arith.constant 0 : index
      %265 = vector.load %arg11[%c0_98, %c0_99] : memref<8x16xf32, #tpu.memory_space<vmem>>, vector<8x16xf32>
      tpu.vector_store %arg11[%c0_98, %c0_99], %189 {strides = array<i32>} : memref<8x16xf32, #tpu.memory_space<vmem>>, vector<8x16xf32>,
    } else {
    }
    %c6_i32 = arith.constant 6 : i32
    %202 = arith.index_cast %c6_i32 : i32 to index
    %c0_72 = arith.constant 0 : index
    %c0_73 = arith.constant 0 : index
    %203 = vector.load %arg14[%202, %c0_72, %c0_73] : memref<8x8x64xf32, #tpu.memory_space<vmem>>, vector<1x8x64xf32>
    %204 = vector.shape_cast %203 : vector<1x8x64xf32> to vector<8x64xf32>
    %205 = vector.extract_strided_slice %192 {offsets = [0, 0], sizes = [8, 64], strides = [1, 1]} : vector<8x128xf32> to vector<8x64xf32>
    %206 = arith.addf %204, %205 : vector<8x64xf32>
    %207 = math.tanh %206 : vector<8x64xf32>
    %208 = vector.extract_strided_slice %207 {offsets = [0, 0], sizes = [8, 48], strides = [1, 1]} : vector<8x64xf32> to vector<8x48xf32>
    %cst_74 = arith.constant 5.000000e-01 : f32
    %209 = vector.broadcast %cst_74 : f32 to vector<8x48xf32>
    %210 = arith.mulf %209, %208 : vector<8x48xf32>
    %cst_75 = arith.constant 5.000000e-01 : f32
    %211 = vector.broadcast %cst_75 : f32 to vector<8x48xf32>
    %212 = arith.addf %210, %211 : vector<8x48xf32>
    %213 = vector.extract_strided_slice %212 {offsets = [0, 0], sizes = [8, 16], strides = [1, 1]} : vector<8x48xf32> to vector<8x16xf32>
    %214 = vector.extract_strided_slice %212 {offsets = [0, 16], sizes = [8, 16], strides = [1, 1]} : vector<8x48xf32> to vector<8x16xf32>
    %215 = vector.extract_strided_slice %212 {offsets = [0, 32], sizes = [8, 16], strides = [1, 1]} : vector<8x48xf32> to vector<8x16xf32>
    %216 = vector.extract_strided_slice %207 {offsets = [0, 48], sizes = [8, 16], strides = [1, 1]} : vector<8x64xf32> to vector<8x16xf32>
    %217 = arith.mulf %214, %189 : vector<8x16xf32>
    %218 = arith.mulf %213, %216 : vector<8x16xf32>
    %219 = arith.addf %217, %218 : vector<8x16xf32>
    %220 = math.tanh %219 : vector<8x16xf32>
    %221 = arith.mulf %215, %220 : vector<8x16xf32>
    %cst_76 = arith.constant dense<0.000000e+00> : vector<8x128xf32>
    %222 = tpu.matmul %221, %14, %cst_76 {dimension_numbers = #tpu.dot_dimension_numbers<[1], [0], [0], [1], [0, 0, 1, 1], [], []>} : vector<8x16xf32>, vector<16x128xf32>, vector<8x128xf32> -> vector<8x128xf32>
    %223 = arith.addf %222, %17 : vector<8x128xf32>
    %224 = arith.index_cast %c6_i32 : i32 to index
    %c0_77 = arith.constant 0 : index
    %c0_78 = arith.constant 0 : index
    %225 = vector.load %arg9[%224, %c0_77, %c0_78] : memref<8x8x128xf32, #tpu.memory_space<vmem>>, vector<1x8x128xf32>
    %226 = vector.shape_cast %225 : vector<1x8x128xf32> to vector<8x128xf32>
    %227 = vector.shape_cast %223 : vector<8x128xf32> to vector<1x8x128xf32>
    tpu.vector_store %arg9[%224, %c0_77, %c0_78], %227 {strides = array<i32>} : memref<8x8x128xf32, #tpu.memory_space<vmem>>, vector<1x8x128xf32>,
    %228 = arith.addi %21, %c6_i32 : i32
    %c7_i32_79 = arith.constant 7 : i32
    %229 = arith.cmpi eq, %228, %c7_i32_79 : i32
    %230 = arith.extui %229 : i1 to i32
    %c0_i32_80 = arith.constant 0 : i32
    %231 = arith.cmpi ne, %230, %c0_i32_80 : i32
    scf.if %231 {
      %c0_96 = arith.constant 0 : index
      %c0_97 = arith.constant 0 : index
      %264 = vector.load %arg10[%c0_96, %c0_97] : memref<8x16xf32, #tpu.memory_space<vmem>>, vector<8x16xf32>
      tpu.vector_store %arg10[%c0_96, %c0_97], %221 {strides = array<i32>} : memref<8x16xf32, #tpu.memory_space<vmem>>, vector<8x16xf32>,
      %c0_98 = arith.constant 0 : index
      %c0_99 = arith.constant 0 : index
      %265 = vector.load %arg11[%c0_98, %c0_99] : memref<8x16xf32, #tpu.memory_space<vmem>>, vector<8x16xf32>
      tpu.vector_store %arg11[%c0_98, %c0_99], %219 {strides = array<i32>} : memref<8x16xf32, #tpu.memory_space<vmem>>, vector<8x16xf32>,
    } else {
    }
    %c7_i32_81 = arith.constant 7 : i32
    %232 = arith.index_cast %c7_i32_81 : i32 to index
    %c0_82 = arith.constant 0 : index
    %c0_83 = arith.constant 0 : index
    %233 = vector.load %arg14[%232, %c0_82, %c0_83] : memref<8x8x64xf32, #tpu.memory_space<vmem>>, vector<1x8x64xf32>
    %234 = vector.shape_cast %233 : vector<1x8x64xf32> to vector<8x64xf32>
    %235 = vector.extract_strided_slice %222 {offsets = [0, 0], sizes = [8, 64], strides = [1, 1]} : vector<8x128xf32> to vector<8x64xf32>
    %236 = arith.addf %234, %235 : vector<8x64xf32>
    %237 = math.tanh %236 : vector<8x64xf32>
    %238 = vector.extract_strided_slice %237 {offsets = [0, 0], sizes = [8, 48], strides = [1, 1]} : vector<8x64xf32> to vector<8x48xf32>
    %cst_84 = arith.constant 5.000000e-01 : f32
    %239 = vector.broadcast %cst_84 : f32 to vector<8x48xf32>
    %240 = arith.mulf %239, %238 : vector<8x48xf32>
    %cst_85 = arith.constant 5.000000e-01 : f32
    %241 = vector.broadcast %cst_85 : f32 to vector<8x48xf32>
    %242 = arith.addf %240, %241 : vector<8x48xf32>
    %243 = vector.extract_strided_slice %242 {offsets = [0, 0], sizes = [8, 16], strides = [1, 1]} : vector<8x48xf32> to vector<8x16xf32>
    %244 = vector.extract_strided_slice %242 {offsets = [0, 16], sizes = [8, 16], strides = [1, 1]} : vector<8x48xf32> to vector<8x16xf32>
    %245 = vector.extract_strided_slice %242 {offsets = [0, 32], sizes = [8, 16], strides = [1, 1]} : vector<8x48xf32> to vector<8x16xf32>
    %246 = vector.extract_strided_slice %237 {offsets = [0, 48], sizes = [8, 16], strides = [1, 1]} : vector<8x64xf32> to vector<8x16xf32>
    %247 = arith.mulf %244, %219 : vector<8x16xf32>
    %248 = arith.mulf %243, %246 : vector<8x16xf32>
    %249 = arith.addf %247, %248 : vector<8x16xf32>
    %250 = math.tanh %249 : vector<8x16xf32>
    %251 = arith.mulf %245, %250 : vector<8x16xf32>
    %cst_86 = arith.constant dense<0.000000e+00> : vector<8x128xf32>
    %252 = tpu.matmul %251, %14, %cst_86 {dimension_numbers = #tpu.dot_dimension_numbers<[1], [0], [0], [1], [0, 0, 1, 1], [], []>} : vector<8x16xf32>, vector<16x128xf32>, vector<8x128xf32> -> vector<8x128xf32>
    %253 = arith.addf %252, %17 : vector<8x128xf32>
    %254 = arith.index_cast %c7_i32_81 : i32 to index
    %c0_87 = arith.constant 0 : index
    %c0_88 = arith.constant 0 : index
    %255 = vector.load %arg9[%254, %c0_87, %c0_88] : memref<8x8x128xf32, #tpu.memory_space<vmem>>, vector<1x8x128xf32>
    %256 = vector.shape_cast %255 : vector<1x8x128xf32> to vector<8x128xf32>
    %257 = vector.shape_cast %253 : vector<8x128xf32> to vector<1x8x128xf32>
    tpu.vector_store %arg9[%254, %c0_87, %c0_88], %257 {strides = array<i32>} : memref<8x8x128xf32, #tpu.memory_space<vmem>>, vector<1x8x128xf32>,
    %258 = arith.addi %21, %c7_i32_81 : i32
    %c7_i32_89 = arith.constant 7 : i32
    %259 = arith.cmpi eq, %258, %c7_i32_89 : i32
    %260 = arith.extui %259 : i1 to i32
    %c0_i32_90 = arith.constant 0 : i32
    %261 = arith.cmpi ne, %260, %c0_i32_90 : i32
    scf.if %261 {
      %c0_96 = arith.constant 0 : index
      %c0_97 = arith.constant 0 : index
      %264 = vector.load %arg10[%c0_96, %c0_97] : memref<8x16xf32, #tpu.memory_space<vmem>>, vector<8x16xf32>
      tpu.vector_store %arg10[%c0_96, %c0_97], %251 {strides = array<i32>} : memref<8x16xf32, #tpu.memory_space<vmem>>, vector<8x16xf32>,
      %c0_98 = arith.constant 0 : index
      %c0_99 = arith.constant 0 : index
      %265 = vector.load %arg11[%c0_98, %c0_99] : memref<8x16xf32, #tpu.memory_space<vmem>>, vector<8x16xf32>
      tpu.vector_store %arg11[%c0_98, %c0_99], %249 {strides = array<i32>} : memref<8x16xf32, #tpu.memory_space<vmem>>, vector<8x16xf32>,
    } else {
    }
    %c8_i32_91 = arith.constant 8 : i32
    %c0_92 = arith.constant 0 : index
    %c0_93 = arith.constant 0 : index
    %262 = vector.load %arg12[%c0_92, %c0_93] : memref<8x16xf32, #tpu.memory_space<vmem>>, vector<8x16xf32>
    tpu.vector_store %arg12[%c0_92, %c0_93], %251 {strides = array<i32>} : memref<8x16xf32, #tpu.memory_space<vmem>>, vector<8x16xf32>,
    %c0_94 = arith.constant 0 : index
    %c0_95 = arith.constant 0 : index
    %263 = vector.load %arg13[%c0_94, %c0_95] : memref<8x16xf32, #tpu.memory_space<vmem>>, vector<8x16xf32>
    tpu.vector_store %arg13[%c0_94, %c0_95], %249 {strides = array<i32>} : memref<8x16xf32, #tpu.memory_space<vmem>>, vector<8x16xf32>,
    return
  }
  func.func @transform_0(%arg0: i32, %arg1: i32) -> (i32, i32, i32) {
    %c0_i32 = arith.constant 0 : i32
    %c0_i32_0 = arith.constant 0 : i32
    return %arg1, %arg0, %c0_i32 : i32, i32, i32
  }
  func.func @transform_1(%arg0: i32, %arg1: i32) -> (i32, i32) {
    %c0_i32 = arith.constant 0 : i32
    %c0_i32_0 = arith.constant 0 : i32
    return %arg0, %c0_i32 : i32, i32
  }
  func.func @transform_2(%arg0: i32, %arg1: i32) -> (i32, i32) {
    %c0_i32 = arith.constant 0 : i32
    %c0_i32_0 = arith.constant 0 : i32
    return %arg0, %c0_i32 : i32, i32
  }
  func.func @transform_3(%arg0: i32, %arg1: i32) -> (i32, i32) {
    %c0_i32 = arith.constant 0 : i32
    %c0_i32_0 = arith.constant 0 : i32
    %c0_i32_1 = arith.constant 0 : i32
    return %c0_i32, %c0_i32_0 : i32, i32
  }
  func.func @transform_4(%arg0: i32, %arg1: i32) -> (i32, i32) {
    %c0_i32 = arith.constant 0 : i32
    %c0_i32_0 = arith.constant 0 : i32
    %c0_i32_1 = arith.constant 0 : i32
    return %c0_i32, %c0_i32_0 : i32, i32
  }
  func.func @transform_5(%arg0: i32, %arg1: i32) -> (i32, i32) {
    %c0_i32 = arith.constant 0 : i32
    %c0_i32_0 = arith.constant 0 : i32
    %c0_i32_1 = arith.constant 0 : i32
    return %c0_i32, %c0_i32_0 : i32, i32
  }
  func.func @transform_6(%arg0: i32, %arg1: i32) -> (i32, i32) {
    %c0_i32 = arith.constant 0 : i32
    %c0_i32_0 = arith.constant 0 : i32
    %c0_i32_1 = arith.constant 0 : i32
    return %c0_i32, %c0_i32_0 : i32, i32
  }
  func.func @transform_7(%arg0: i32, %arg1: i32) -> (i32, i32, i32) {
    %c0_i32 = arith.constant 0 : i32
    %c0_i32_0 = arith.constant 0 : i32
    return %arg1, %arg0, %c0_i32 : i32, i32, i32
  }
  func.func @transform_8(%arg0: i32, %arg1: i32) -> (i32, i32) {
    %c0_i32 = arith.constant 0 : i32
    %c0_i32_0 = arith.constant 0 : i32
    return %arg0, %c0_i32 : i32, i32
  }
  func.func @transform_9(%arg0: i32, %arg1: i32) -> (i32, i32) {
    %c0_i32 = arith.constant 0 : i32
    %c0_i32_0 = arith.constant 0 : i32
    return %arg0, %c0_i32 : i32, i32
  }
}

</mosaic_0001>

<llo_original>
// kernel: tpu_custom_call.1
$region0: #{tpu_custom_call.1}
  #allocation0 [shape = 'u32[]', space=smem, size = 0x4, offset = 0x4, fixed_abs, tag = 'smem constant byte address 0x4 - core index']
  #allocation1 [shape = 'u32[144,128]{1,0:T(1,128)}', space=vmem, size = 0x12000, scoped, tag = 'internal scratch']
  #allocation2 [shape = 'f32[8,16]{1,0:T(8,128)}', space=vmem, size = 0x1000, scoped, tag = 'scratch operand']
  #allocation3 [shape = 'f32[8,16]{1,0:T(8,128)}', space=vmem, size = 0x1000, scoped, tag = 'scratch operand']
  #allocation4 [shape = 'f32[8,8,64]{2,1,0:T(8,128)}', space=vmem, size = 0x8000, scoped, tag = 'scratch operand']
  %s0 = inlined_call_operand.vmem [shape: f32[8,8,1], index: 0, kind: input, shape index: {}]
  %s1 = inlined_call_operand.vmem [shape: f32[8,16], index: 1, kind: input, shape index: {}]
  %s2 = inlined_call_operand.vmem [shape: f32[8,16], index: 2, kind: input, shape index: {}]
  %s3 = inlined_call_operand.vmem [shape: f32[1,64], index: 3, kind: input, shape index: {}]
  %s4 = inlined_call_operand.vmem [shape: f32[1,64], index: 4, kind: input, shape index: {}]
  %s5 = inlined_call_operand.vmem [shape: f32[16,128], index: 5, kind: input, shape index: {}]
  %s6 = inlined_call_operand.vmem [shape: f32[1,128], index: 6, kind: input, shape index: {}]
  %s7 = inlined_call_operand.hbm [shape: f32[8,8,128], index: 7, kind: output, shape index: {0}]
  %s8 = inlined_call_operand.hbm [shape: f32[8,16], index: 8, kind: output, shape index: {1}]
  %s9 = inlined_call_operand.hbm [shape: f32[8,16], index: 9, kind: output, shape index: {2}]
  %10 = xla_tuple %s7, %s8, %s9
  %s11 = sld [smem:[#allocation0]]
  $region90: #{tpu_custom_call.1} parent=0
    _
  %s13 = ssub.s32 1, %s11
  %s14 = scalar_select 0, %s13, %s11
  $region1: #{tpu_custom_call.1} parent=0
    #allocation5 [shape = 'u8[32768]{0}', space=vmem, size = 0x8000, scoped, tag = 'output window, operand 0, single buffered']
    #allocation6 [shape = 's32[1]{0}', space=sflag, size = 0x4, scoped, tag = 'scoped memory for tpu_custom_call.1']
    #allocation7 [shape = 'u8[4096]{0}', space=vmem, size = 0x1000, scoped, tag = 'output window, operand 1, single buffered']
    #allocation8 [shape = 's32[1]{0}', space=sflag, size = 0x4, scoped, tag = 'scoped memory for tpu_custom_call.1']
    #allocation9 [shape = 'u8[4096]{0}', space=vmem, size = 0x1000, scoped, tag = 'output window, operand 2, single buffered']
    %15 = vsyncpa [#allocation6], 0
    %16 = vsyncpa [#allocation8], 0
    // Predicated region
    $region2: #{tpu_custom_call.1} parent=1 // pred_check
      _
    $region3: #{tpu_custom_call.1} parent=1 // pred_check_branch
      %18 = sbr.rel (0) target = $region5
    $region4: #{tpu_custom_call.1} parent=1 // pred_region
      _
    $region5: #{tpu_custom_call.1} parent=1 // pred_fallthru
      _
    // Predicated region
    $region6: #{tpu_custom_call.1} parent=1 // pred_check
      _
    $region7: #{tpu_custom_call.1} parent=1 // pred_check_branch
      %20 = sbr.rel (0) target = $region9
    $region8: #{tpu_custom_call.1} parent=1 // pred_region
      _
    $region9: #{tpu_custom_call.1} parent=1 // pred_fallthru
      _
    // Predicated region
    $region10: #{tpu_custom_call.1} parent=1 // pred_check
      _
    $region11: #{tpu_custom_call.1} parent=1 // pred_check_branch
      %22 = sbr.rel (0) target = $region13
    $region12: #{tpu_custom_call.1} parent=1 // pred_region
      _
    $region13: #{tpu_custom_call.1} parent=1 // pred_fallthru
      _
    // Predicated region
    $region14: #{tpu_custom_call.1} parent=1 // pred_check
      _
    $region15: #{tpu_custom_call.1} parent=1 // pred_check_branch
      %24 = sbr.rel (0) target = $region17
    $region16: #{tpu_custom_call.1} parent=1 // pred_region
      _
    $region17: #{tpu_custom_call.1} parent=1 // pred_fallthru
      _
    // Predicated region
    $region18: #{tpu_custom_call.1} parent=1 // pred_check
      _
    $region19: #{tpu_custom_call.1} parent=1 // pred_check_branch
      %26 = sbr.rel (0) target = $region21
    $region20: #{tpu_custom_call.1} parent=1 // pred_region
      _
    $region21: #{tpu_custom_call.1} parent=1 // pred_fallthru
      _
    // Predicated region
    $region22: #{tpu_custom_call.1} parent=1 // pred_check
      _
    $region23: #{tpu_custom_call.1} parent=1 // pred_check_branch
      %28 = sbr.rel (0) target = $region25
    $region24: #{tpu_custom_call.1} parent=1 // pred_region
      _
    $region25: #{tpu_custom_call.1} parent=1 // pred_fallthru
      _
    // Predicated region
    $region26: #{tpu_custom_call.1} parent=1 // pred_check
      _
    $region27: #{tpu_custom_call.1} parent=1 // pred_check_branch
      %30 = sbr.rel (0) target = $region29
    $region28: #{tpu_custom_call.1} parent=1 // pred_region
      _
    $region29: #{tpu_custom_call.1} parent=1 // pred_fallthru
      _
    %p31 = scmp.eq.s32.totalorder 0, 0
    // Predicated region
    $region30: #{tpu_custom_call.1} parent=1 // pred_check
      %p32 = pneg %p31
    $region31: #{tpu_custom_call.1} parent=1 // pred_check_branch
      %34 = sbr.rel (%p32) target = $region33
    $region32: #{tpu_custom_call.1} parent=1 // pred_region
      %v35 = vld [vmem:[%s1] sm:$0xff]
      %vm36 = vcmask 130048
      %37 = vst.msk [vmem:[#allocation2] sm:$0xff] %vm36, %v35
      %v38 = vld [vmem:[%s2] sm:$0xff]
      %39 = vst.msk [vmem:[#allocation3] sm:$0xff] %vm36, %v38
    $region33: #{tpu_custom_call.1} parent=1 // pred_fallthru
      _
    %v40 = vld [vmem:[%s0] sm:$0xff]
    %v41 = vld [vmem:[%s0 + $0x8] sm:$0xff]
    %v42 = vld [vmem:[%s0 + $0x10] sm:$0xff]
    %v43 = vld [vmem:[%s0 + $0x18] sm:$0xff]
    %v44 = vld [vmem:[%s0 + $0x20] sm:$0xff]
    %v45 = vld [vmem:[%s0 + $0x28] sm:$0xff]
    %v46 = vld [vmem:[%s0 + $0x30] sm:$0xff]
    %v47 = vld [vmem:[%s0 + $0x38] sm:$0xff]
    %v48 = vld [vmem:[%s3] sm:$0x1]
    %50 = vset.pattern.permute.xlu0 0
    %51 = vperm.xlu0 %50, %v40
    %v52 = vpop.permute.xlu0 %51
    %55 = vset.pattern.permute.xlu0 0
    %56 = vperm.xlu0 %55, %v41
    %v57 = vpop.permute.xlu0 %56
    %60 = vset.pattern.permute.xlu0 0
    %61 = vperm.xlu0 %60, %v42
    %v62 = vpop.permute.xlu0 %61
    %65 = vset.pattern.permute.xlu0 0
    %66 = vperm.xlu0 %65, %v43
    %v67 = vpop.permute.xlu0 %66
    %70 = vset.pattern.permute.xlu0 0
    %71 = vperm.xlu0 %70, %v44
    %v72 = vpop.permute.xlu0 %71
    %75 = vset.pattern.permute.xlu0 0
    %76 = vperm.xlu0 %75, %v45
    %v77 = vpop.permute.xlu0 %76
    %80 = vset.pattern.permute.xlu0 0
    %81 = vperm.xlu0 %80, %v46
    %v82 = vpop.permute.xlu0 %81
    %85 = vset.pattern.permute.xlu0 0
    %86 = vperm.xlu0 %85, %v47
    %v87 = vpop.permute.xlu0 %86
    %v90 = vlaneseq
    %v91 = vshrl.u32 %v90, 7
    %v92 = vsub.s32 0, %v91
    %v93 = vrot.slane %v48, %v92
    %v95 = vmul.f32 %v52, %v93
    %v96 = vmul.f32 %v57, %v93
    %v97 = vmul.f32 %v62, %v93
    %v98 = vmul.f32 %v67, %v93
    %v99 = vmul.f32 %v72, %v93
    %v100 = vmul.f32 %v77, %v93
    %v101 = vmul.f32 %v82, %v93
    %v102 = vmul.f32 %v87, %v93
    %v103 = vld [vmem:[%s4] sm:$0x1]
    %v105 = vlaneseq
    %v106 = vshrl.u32 %v105, 7
    %v107 = vsub.s32 0, %v106
    %v108 = vrot.slane %v103, %v107
    %v110 = vadd.f32 %v95, %v108
    %v111 = vadd.f32 %v96, %v108
    %v112 = vadd.f32 %v97, %v108
    %v113 = vadd.f32 %v98, %v108
    %v114 = vadd.f32 %v99, %v108
    %v115 = vadd.f32 %v100, %v108
    %v116 = vadd.f32 %v101, %v108
    %v117 = vadd.f32 %v102, %v108
    %vm118 = vcmask 523264
    %119 = vst.msk [vmem:[#allocation4] sm:$0xff] %vm118, %v110
    %120 = vst.msk [vmem:[#allocation4 + $0x8] sm:$0xff] %vm118, %v111
    %121 = vst.msk [vmem:[#allocation4 + $0x10] sm:$0xff] %vm118, %v112
    %122 = vst.msk [vmem:[#allocation4 + $0x18] sm:$0xff] %vm118, %v113
    %123 = vst.msk [vmem:[#allocation4 + $0x20] sm:$0xff] %vm118, %v114
    %124 = vst.msk [vmem:[#allocation4 + $0x28] sm:$0xff] %vm118, %v115
    %125 = vst.msk [vmem:[#allocation4 + $0x30] sm:$0xff] %vm118, %v116
    %126 = vst.msk [vmem:[#allocation4 + $0x38] sm:$0xff] %vm118, %v117
    %v127 = vld [vmem:[%s5] sm:$0xff]
    %v128 = vld [vmem:[%s5 + $0x8] sm:$0xff]
    %v129 = vld [vmem:[%s6] sm:$0x1]
    %v131 = vlaneseq
    %v132 = vshrl.u32 %v131, 7
    %v133 = vsub.s32 0, %v132
    %v134 = vrot.slane %v129, %v133
    %v136 = vld [vmem:[#allocation2] sm:$0xff]
    %v137 = vld [vmem:[#allocation3] sm:$0xff]
    %vm138 = vcmask 130048
    %v140 = vsel %vm138, %v136, 0
    %142 = vmatprep.subr.mxu0 0.0
    %143 = vmatpush1.msra.mxu0 %v127
    %144 = vmatprep.subr.mxu0 0.0
    %145 = vmatpush1.msra.mxu0 %v128
    %146 = vmatprep.subr.mxu0 0.0
    %147 = vmatpush1.msra.mxu0 0.0
    %148 = vmatprep.subr.mxu0 0.0
    %149 = vmatpush1.msra.mxu0 0.0
    %150 = vmatprep.subr.mxu0 0.0
    %151 = vmatpush1.msra.mxu0 0.0
    %152 = vmatprep.subr.mxu0 0.0
    %153 = vmatpush1.msra.mxu0 0.0
    %154 = vmatprep.subr.mxu0 0.0
    %155 = vmatpush1.msra.mxu0 0.0
    %156 = vmatprep.subr.mxu0 0.0
    %157 = vmatpush1.msra.mxu0 0.0
    %158 = vmatprep.subr.mxu0 0.0
    %159 = vmatpush1.msra.mxu0 0.0
    %160 = vmatprep.subr.mxu0 0.0
    %161 = vmatpush1.msra.mxu0 0.0
    %162 = vmatprep.subr.mxu0 0.0
    %163 = vmatpush1.msra.mxu0 0.0
    %164 = vmatprep.subr.mxu0 0.0
    %165 = vmatpush1.msra.mxu0 0.0
    %166 = vmatprep.subr.mxu0 0.0
    %167 = vmatpush1.msra.mxu0 0.0
    %168 = vmatprep.subr.mxu0 0.0
    %169 = vmatpush1.msra.mxu0 0.0
    %170 = vmatprep.subr.mxu0 0.0
    %171 = vmatpush1.msra.mxu0 0.0
    %172 = vmatprep.subr.mxu0 0.0
    %173 = vmatpush1.msra.mxu0 0.0
    %174 = vmatprep.subr.mxu0 0.0
    %175 = vmatpush1.msra.mxu0 0.0
    %176 = vmatprep.subr.mxu0 0.0
    %177 = vmatpush1.msra.mxu0 0.0
    %178 = vmatprep.subr.mxu0 0.0
    %179 = vmatpush1.msra.mxu0 0.0
    %180 = vmatprep.subr.mxu0 0.0
    %181 = vmatpush1.msra.mxu0 0.0
    %182 = vmatprep.subr.mxu0 0.0
    %183 = vmatpush1.msra.mxu0 0.0
    %184 = vmatprep.subr.mxu0 0.0
    %185 = vmatpush1.msra.mxu0 0.0
    %186 = vmatprep.subr.mxu0 0.0
    %187 = vmatpush1.msra.mxu0 0.0
    %188 = vmatprep.subr.mxu0 0.0
    %189 = vmatpush1.msra.mxu0 0.0
    %190 = vmatprep.subr.mxu0 0.0
    %191 = vmatpush1.msra.mxu0 0.0
    %192 = vmatprep.subr.mxu0 0.0
    %193 = vmatpush1.msra.mxu0 0.0
    %194 = vmatprep.subr.mxu0 0.0
    %195 = vmatpush1.msra.mxu0 0.0
    %196 = vmatprep.subr.mxu0 0.0
    %197 = vmatpush1.msra.mxu0 0.0
    %198 = vmatprep.subr.mxu0 0.0
    %199 = vmatpush1.msra.mxu0 0.0
    %200 = vmatprep.subr.mxu0 0.0
    %201 = vmatpush1.msra.mxu0 0.0
    %202 = vmatprep.subr.mxu0 0.0
    %203 = vmatpush1.msra.mxu0 0.0
    %204 = vmatprep.subr.mxu0 0.0
    %205 = vmatpush1.msra.mxu0 0.0
    %206 = vmatprep.mubr.f32.mxu0 0.0
    %207 = vmatmul.mubr.f32.gmra.mrb[0].mxu0 %v140
    %v208 = vpop.f32.mrb[0].mxu0
    %v209 = vadd.f32 0.0, %v208
    %v210 = vpop.f32.mrb[0].mxu0
    %211 = vdwg.mxu0
    %s212 = smul.u32 0, 8
    %v213 = vld [vmem:[#allocation4] sm:$0xff]
    %v214 = vadd.f32 %v213, %v209
    %v215 = vtanh.pop %v214
    %v216 = vmul.f32 %v215, 0.5
    %v217 = vadd.f32 %v216, 0.5
    %219 = vrot.lane.b32.xlu0 %v137, 16
    %v220 = vpop.permute.xlu0 %219
    %v222 = vmul.f32 %v217, %v220
    %224 = vrot.lane.b32.xlu0 %v215, 80
    %v225 = vpop.permute.xlu0 %224
    %v227 = vmul.f32 %v217, %v225
    %229 = vrot.lane.b32.xlu0 %v227, 16
    %v230 = vpop.permute.xlu0 %229
    %v232 = vadd.f32 %v222, %v230
    %v233 = vtanh.pop %v232
    %235 = vrot.lane.b32.xlu0 %v233, 16
    %v236 = vpop.permute.xlu0 %235
    %v238 = vmul.f32 %v217, %v236
    %240 = vrot.lane.b32.xlu0 %v238, 96
    %v241 = vpop.permute.xlu0 %240
    %v242 = vsel %vm138, %v241, 0
    %244 = vmatprep.subr.mxu0 0.0
    %245 = vmatpush1.msra.mxu0 %v127
    %246 = vmatprep.subr.mxu0 0.0
    %247 = vmatpush1.msra.mxu0 %v128
    %248 = vmatprep.subr.mxu0 0.0
    %249 = vmatpush1.msra.mxu0 0.0
    %250 = vmatprep.subr.mxu0 0.0
    %251 = vmatpush1.msra.mxu0 0.0
    %252 = vmatprep.subr.mxu0 0.0
    %253 = vmatpush1.msra.mxu0 0.0
    %254 = vmatprep.subr.mxu0 0.0
    %255 = vmatpush1.msra.mxu0 0.0
    %256 = vmatprep.subr.mxu0 0.0
    %257 = vmatpush1.msra.mxu0 0.0
    %258 = vmatprep.subr.mxu0 0.0
    %259 = vmatpush1.msra.mxu0 0.0
    %260 = vmatprep.subr.mxu0 0.0
    %261 = vmatpush1.msra.mxu0 0.0
    %262 = vmatprep.subr.mxu0 0.0
    %263 = vmatpush1.msra.mxu0 0.0
    %264 = vmatprep.subr.mxu0 0.0
    %265 = vmatpush1.msra.mxu0 0.0
    %266 = vmatprep.subr.mxu0 0.0
    %267 = vmatpush1.msra.mxu0 0.0
    %268 = vmatprep.subr.mxu0 0.0
    %269 = vmatpush1.msra.mxu0 0.0
    %270 = vmatprep.subr.mxu0 0.0
    %271 = vmatpush1.msra.mxu0 0.0
    %272 = vmatprep.subr.mxu0 0.0
    %273 = vmatpush1.msra.mxu0 0.0
    %274 = vmatprep.subr.mxu0 0.0
    %275 = vmatpush1.msra.mxu0 0.0
    %276 = vmatprep.subr.mxu0 0.0
    %277 = vmatpush1.msra.mxu0 0.0
    %278 = vmatprep.subr.mxu0 0.0
    %279 = vmatpush1.msra.mxu0 0.0
    %280 = vmatprep.subr.mxu0 0.0
    %281 = vmatpush1.msra.mxu0 0.0
    %282 = vmatprep.subr.mxu0 0.0
    %283 = vmatpush1.msra.mxu0 0.0
    %284 = vmatprep.subr.mxu0 0.0
    %285 = vmatpush1.msra.mxu0 0.0
    %286 = vmatprep.subr.mxu0 0.0
    %287 = vmatpush1.msra.mxu0 0.0
    %288 = vmatprep.subr.mxu0 0.0
    %289 = vmatpush1.msra.mxu0 0.0
    %290 = vmatprep.subr.mxu0 0.0
    %291 = vmatpush1.msra.mxu0 0.0
    %292 = vmatprep.subr.mxu0 0.0
    %293 = vmatpush1.msra.mxu0 0.0
    %294 = vmatprep.subr.mxu0 0.0
    %295 = vmatpush1.msra.mxu0 0.0
    %296 = vmatprep.subr.mxu0 0.0
    %297 = vmatpush1.msra.mxu0 0.0
    %298 = vmatprep.subr.mxu0 0.0
    %299 = vmatpush1.msra.mxu0 0.0
    %300 = vmatprep.subr.mxu0 0.0
    %301 = vmatpush1.msra.mxu0 0.0
    %302 = vmatprep.subr.mxu0 0.0
    %303 = vmatpush1.msra.mxu0 0.0
    %304 = vmatprep.subr.mxu0 0.0
    %305 = vmatpush1.msra.mxu0 0.0
    %306 = vmatprep.subr.mxu0 0.0
    %307 = vmatpush1.msra.mxu0 0.0
    %308 = vmatprep.mubr.f32.mxu0 0.0
    %309 = vmatmul.mubr.f32.gmra.mrb[0].mxu0 %v242
    %v310 = vpop.f32.mrb[0].mxu0
    %v311 = vadd.f32 0.0, %v310
    %v312 = vpop.f32.mrb[0].mxu0
    %313 = vdwg.mxu0
    %v314 = vadd.f32 %v311, %v134
    %315 = vst [vmem:[#allocation5] sm:$0xff] %v314
    %p316 = scmp.eq.s32.totalorder %s212, 7
    // Predicated region
    $region34: #{tpu_custom_call.1} parent=1 // pred_check
      %p317 = pneg %p316
    $region35: #{tpu_custom_call.1} parent=1 // pred_check_branch
      %319 = sbr.rel (%p317) target = $region37
    $region36: #{tpu_custom_call.1} parent=1 // pred_region
      %321 = vst.msk [vmem:[#allocation7] sm:$0xff] %vm138, %v241
      %323 = vrot.lane.b32.xlu0 %v232, 112
      %v324 = vpop.permute.xlu0 %323
      %326 = vst.msk [vmem:[#allocation9] sm:$0xff] %vm138, %v324
    $region37: #{tpu_custom_call.1} parent=1 // pred_fallthru
      _
    %s327 = scalar_lea.vmem [#allocation4], 8
    %v328 = vld [vmem:[%s327] sm:$0xff]
    %v329 = vadd.f32 %v328, %v311
    %v330 = vtanh.pop %v329
    %v331 = vmul.f32 %v330, 0.5
    %v332 = vadd.f32 %v331, 0.5
    %v333 = vmul.f32 %v332, %v232
    %335 = vrot.lane.b32.xlu0 %v330, 80
    %v336 = vpop.permute.xlu0 %335
    %v338 = vmul.f32 %v332, %v336
    %340 = vrot.lane.b32.xlu0 %v338, 16
    %v341 = vpop.permute.xlu0 %340
    %v343 = vadd.f32 %v333, %v341
    %v344 = vtanh.pop %v343
    %346 = vrot.lane.b32.xlu0 %v344, 16
    %v347 = vpop.permute.xlu0 %346
    %v349 = vmul.f32 %v332, %v347
    %351 = vrot.lane.b32.xlu0 %v349, 96
    %v352 = vpop.permute.xlu0 %351
    %v353 = vsel %vm138, %v352, 0
    %355 = vmatprep.subr.mxu0 0.0
    %356 = vmatpush1.msra.mxu0 %v127
    %357 = vmatprep.subr.mxu0 0.0
    %358 = vmatpush1.msra.mxu0 %v128
    %359 = vmatprep.subr.mxu0 0.0
    %360 = vmatpush1.msra.mxu0 0.0
    %361 = vmatprep.subr.mxu0 0.0
    %362 = vmatpush1.msra.mxu0 0.0
    %363 = vmatprep.subr.mxu0 0.0
    %364 = vmatpush1.msra.mxu0 0.0
    %365 = vmatprep.subr.mxu0 0.0
    %366 = vmatpush1.msra.mxu0 0.0
    %367 = vmatprep.subr.mxu0 0.0
    %368 = vmatpush1.msra.mxu0 0.0
    %369 = vmatprep.subr.mxu0 0.0
    %370 = vmatpush1.msra.mxu0 0.0
    %371 = vmatprep.subr.mxu0 0.0
    %372 = vmatpush1.msra.mxu0 0.0
    %373 = vmatprep.subr.mxu0 0.0
    %374 = vmatpush1.msra.mxu0 0.0
    %375 = vmatprep.subr.mxu0 0.0
    %376 = vmatpush1.msra.mxu0 0.0
    %377 = vmatprep.subr.mxu0 0.0
    %378 = vmatpush1.msra.mxu0 0.0
    %379 = vmatprep.subr.mxu0 0.0
    %380 = vmatpush1.msra.mxu0 0.0
    %381 = vmatprep.subr.mxu0 0.0
    %382 = vmatpush1.msra.mxu0 0.0
    %383 = vmatprep.subr.mxu0 0.0
    %384 = vmatpush1.msra.mxu0 0.0
    %385 = vmatprep.subr.mxu0 0.0
    %386 = vmatpush1.msra.mxu0 0.0
    %387 = vmatprep.subr.mxu0 0.0
    %388 = vmatpush1.msra.mxu0 0.0
    %389 = vmatprep.subr.mxu0 0.0
    %390 = vmatpush1.msra.mxu0 0.0
    %391 = vmatprep.subr.mxu0 0.0
    %392 = vmatpush1.msra.mxu0 0.0
    %393 = vmatprep.subr.mxu0 0.0
    %394 = vmatpush1.msra.mxu0 0.0
    %395 = vmatprep.subr.mxu0 0.0
    %396 = vmatpush1.msra.mxu0 0.0
    %397 = vmatprep.subr.mxu0 0.0
    %398 = vmatpush1.msra.mxu0 0.0
    %399 = vmatprep.subr.mxu0 0.0
    %400 = vmatpush1.msra.mxu0 0.0
    %401 = vmatprep.subr.mxu0 0.0
    %402 = vmatpush1.msra.mxu0 0.0
    %403 = vmatprep.subr.mxu0 0.0
    %404 = vmatpush1.msra.mxu0 0.0
    %405 = vmatprep.subr.mxu0 0.0
    %406 = vmatpush1.msra.mxu0 0.0
    %407 = vmatprep.subr.mxu0 0.0
    %408 = vmatpush1.msra.mxu0 0.0
    %409 = vmatprep.subr.mxu0 0.0
    %410 = vmatpush1.msra.mxu0 0.0
    %411 = vmatprep.subr.mxu0 0.0
    %412 = vmatpush1.msra.mxu0 0.0
    %413 = vmatprep.subr.mxu0 0.0
    %414 = vmatpush1.msra.mxu0 0.0
    %415 = vmatprep.subr.mxu0 0.0
    %416 = vmatpush1.msra.mxu0 0.0
    %417 = vmatprep.subr.mxu0 0.0
    %418 = vmatpush1.msra.mxu0 0.0
    %419 = vmatprep.mubr.f32.mxu0 0.0
    %420 = vmatmul.mubr.f32.gmra.mrb[0].mxu0 %v353
    %v421 = vpop.f32.mrb[0].mxu0
    %v422 = vadd.f32 0.0, %v421
    %v423 = vpop.f32.mrb[0].mxu0
    %424 = vdwg.mxu0
    %v425 = vadd.f32 %v422, %v134
    %s426 = scalar_lea.vmem [#allocation5], 8
    %427 = vst [vmem:[%s426] sm:$0xff] %v425
    %s428 = sadd.s32 %s212, 1
    %p429 = scmp.eq.s32.totalorder %s428, 7
    // Predicated region
    $region38: #{tpu_custom_call.1} parent=1 // pred_check
      %p430 = pneg %p429
    $region39: #{tpu_custom_call.1} parent=1 // pred_check_branch
      %432 = sbr.rel (%p430) target = $region41
    $region40: #{tpu_custom_call.1} parent=1 // pred_region
      %434 = vst.msk [vmem:[#allocation7] sm:$0xff] %vm138, %v352
      %436 = vrot.lane.b32.xlu0 %v343, 112
      %v437 = vpop.permute.xlu0 %436
      %439 = vst.msk [vmem:[#allocation9] sm:$0xff] %vm138, %v437
    $region41: #{tpu_custom_call.1} parent=1 // pred_fallthru
      _
    %s440 = scalar_lea.vmem [#allocation4], 16
    %v441 = vld [vmem:[%s440] sm:$0xff]
    %v442 = vadd.f32 %v441, %v422
    %v443 = vtanh.pop %v442
    %v444 = vmul.f32 %v443, 0.5
    %v445 = vadd.f32 %v444, 0.5
    %v446 = vmul.f32 %v445, %v343
    %448 = vrot.lane.b32.xlu0 %v443, 80
    %v449 = vpop.permute.xlu0 %448
    %v451 = vmul.f32 %v445, %v449
    %453 = vrot.lane.b32.xlu0 %v451, 16
    %v454 = vpop.permute.xlu0 %453
    %v456 = vadd.f32 %v446, %v454
    %v457 = vtanh.pop %v456
    %459 = vrot.lane.b32.xlu0 %v457, 16
    %v460 = vpop.permute.xlu0 %459
    %v462 = vmul.f32 %v445, %v460
    %464 = vrot.lane.b32.xlu0 %v462, 96
    %v465 = vpop.permute.xlu0 %464
    %v466 = vsel %vm138, %v465, 0
    %468 = vmatprep.subr.mxu0 0.0
    %469 = vmatpush1.msra.mxu0 %v127
    %470 = vmatprep.subr.mxu0 0.0
    %471 = vmatpush1.msra.mxu0 %v128
    %472 = vmatprep.subr.mxu0 0.0
    %473 = vmatpush1.msra.mxu0 0.0
    %474 = vmatprep.subr.mxu0 0.0
    %475 = vmatpush1.msra.mxu0 0.0
    %476 = vmatprep.subr.mxu0 0.0
    %477 = vmatpush1.msra.mxu0 0.0
    %478 = vmatprep.subr.mxu0 0.0
    %479 = vmatpush1.msra.mxu0 0.0
    %480 = vmatprep.subr.mxu0 0.0
    %481 = vmatpush1.msra.mxu0 0.0
    %482 = vmatprep.subr.mxu0 0.0
    %483 = vmatpush1.msra.mxu0 0.0
    %484 = vmatprep.subr.mxu0 0.0
    %485 = vmatpush1.msra.mxu0 0.0
    %486 = vmatprep.subr.mxu0 0.0
    %487 = vmatpush1.msra.mxu0 0.0
    %488 = vmatprep.subr.mxu0 0.0
    %489 = vmatpush1.msra.mxu0 0.0
    %490 = vmatprep.subr.mxu0 0.0
    %491 = vmatpush1.msra.mxu0 0.0
    %492 = vmatprep.subr.mxu0 0.0
    %493 = vmatpush1.msra.mxu0 0.0
    %494 = vmatprep.subr.mxu0 0.0
    %495 = vmatpush1.msra.mxu0 0.0
    %496 = vmatprep.subr.mxu0 0.0
    %497 = vmatpush1.msra.mxu0 0.0
    %498 = vmatprep.subr.mxu0 0.0
    %499 = vmatpush1.msra.mxu0 0.0
    %500 = vmatprep.subr.mxu0 0.0
    %501 = vmatpush1.msra.mxu0 0.0
    %502 = vmatprep.subr.mxu0 0.0
    %503 = vmatpush1.msra.mxu0 0.0
    %504 = vmatprep.subr.mxu0 0.0
    %505 = vmatpush1.msra.mxu0 0.0
    %506 = vmatprep.subr.mxu0 0.0
    %507 = vmatpush1.msra.mxu0 0.0
    %508 = vmatprep.subr.mxu0 0.0
    %509 = vmatpush1.msra.mxu0 0.0
    %510 = vmatprep.subr.mxu0 0.0
    %511 = vmatpush1.msra.mxu0 0.0
    %512 = vmatprep.subr.mxu0 0.0
    %513 = vmatpush1.msra.mxu0 0.0
    %514 = vmatprep.subr.mxu0 0.0
    %515 = vmatpush1.msra.mxu0 0.0
    %516 = vmatprep.subr.mxu0 0.0
    %517 = vmatpush1.msra.mxu0 0.0
    %518 = vmatprep.subr.mxu0 0.0
    %519 = vmatpush1.msra.mxu0 0.0
    %520 = vmatprep.subr.mxu0 0.0
    %521 = vmatpush1.msra.mxu0 0.0
    %522 = vmatprep.subr.mxu0 0.0
    %523 = vmatpush1.msra.mxu0 0.0
    %524 = vmatprep.subr.mxu0 0.0
    %525 = vmatpush1.msra.mxu0 0.0
    %526 = vmatprep.subr.mxu0 0.0
    %527 = vmatpush1.msra.mxu0 0.0
    %528 = vmatprep.subr.mxu0 0.0
    %529 = vmatpush1.msra.mxu0 0.0
    %530 = vmatprep.subr.mxu0 0.0
    %531 = vmatpush1.msra.mxu0 0.0
    %532 = vmatprep.mubr.f32.mxu0 0.0
    %533 = vmatmul.mubr.f32.gmra.mrb[0].mxu0 %v466
    %v534 = vpop.f32.mrb[0].mxu0
    %v535 = vadd.f32 0.0, %v534
    %v536 = vpop.f32.mrb[0].mxu0
    %537 = vdwg.mxu0
    %v538 = vadd.f32 %v535, %v134
    %s539 = scalar_lea.vmem [#allocation5], 16
    %540 = vst [vmem:[%s539] sm:$0xff] %v538
    %s541 = sadd.s32 %s212, 2
    %p542 = scmp.eq.s32.totalorder %s541, 7
    // Predicated region
    $region42: #{tpu_custom_call.1} parent=1 // pred_check
      %p543 = pneg %p542
    $region43: #{tpu_custom_call.1} parent=1 // pred_check_branch
      %545 = sbr.rel (%p543) target = $region45
    $region44: #{tpu_custom_call.1} parent=1 // pred_region
      %547 = vst.msk [vmem:[#allocation7] sm:$0xff] %vm138, %v465
      %549 = vrot.lane.b32.xlu0 %v456, 112
      %v550 = vpop.permute.xlu0 %549
      %552 = vst.msk [vmem:[#allocation9] sm:$0xff] %vm138, %v550
    $region45: #{tpu_custom_call.1} parent=1 // pred_fallthru
      _
    %s553 = scalar_lea.vmem [#allocation4], 24
    %v554 = vld [vmem:[%s553] sm:$0xff]
    %v555 = vadd.f32 %v554, %v535
    %v556 = vtanh.pop %v555
    %v557 = vmul.f32 %v556, 0.5
    %v558 = vadd.f32 %v557, 0.5
    %v559 = vmul.f32 %v558, %v456
    %561 = vrot.lane.b32.xlu0 %v556, 80
    %v562 = vpop.permute.xlu0 %561
    %v564 = vmul.f32 %v558, %v562
    %566 = vrot.lane.b32.xlu0 %v564, 16
    %v567 = vpop.permute.xlu0 %566
    %v569 = vadd.f32 %v559, %v567
    %v570 = vtanh.pop %v569
    %572 = vrot.lane.b32.xlu0 %v570, 16
    %v573 = vpop.permute.xlu0 %572
    %v575 = vmul.f32 %v558, %v573
    %577 = vrot.lane.b32.xlu0 %v575, 96
    %v578 = vpop.permute.xlu0 %577
    %v579 = vsel %vm138, %v578, 0
    %581 = vmatprep.subr.mxu0 0.0
    %582 = vmatpush1.msra.mxu0 %v127
    %583 = vmatprep.subr.mxu0 0.0
    %584 = vmatpush1.msra.mxu0 %v128
    %585 = vmatprep.subr.mxu0 0.0
    %586 = vmatpush1.msra.mxu0 0.0
    %587 = vmatprep.subr.mxu0 0.0
    %588 = vmatpush1.msra.mxu0 0.0
    %589 = vmatprep.subr.mxu0 0.0
    %590 = vmatpush1.msra.mxu0 0.0
    %591 = vmatprep.subr.mxu0 0.0
    %592 = vmatpush1.msra.mxu0 0.0
    %593 = vmatprep.subr.mxu0 0.0
    %594 = vmatpush1.msra.mxu0 0.0
    %595 = vmatprep.subr.mxu0 0.0
    %596 = vmatpush1.msra.mxu0 0.0
    %597 = vmatprep.subr.mxu0 0.0
    %598 = vmatpush1.msra.mxu0 0.0
    %599 = vmatprep.subr.mxu0 0.0
    %600 = vmatpush1.msra.mxu0 0.0
    %601 = vmatprep.subr.mxu0 0.0
    %602 = vmatpush1.msra.mxu0 0.0
    %603 = vmatprep.subr.mxu0 0.0
    %604 = vmatpush1.msra.mxu0 0.0
    %605 = vmatprep.subr.mxu0 0.0
    %606 = vmatpush1.msra.mxu0 0.0
    %607 = vmatprep.subr.mxu0 0.0
    %608 = vmatpush1.msra.mxu0 0.0
    %609 = vmatprep.subr.mxu0 0.0
    %610 = vmatpush1.msra.mxu0 0.0
    %611 = vmatprep.subr.mxu0 0.0
    %612 = vmatpush1.msra.mxu0 0.0
    %613 = vmatprep.subr.mxu0 0.0
    %614 = vmatpush1.msra.mxu0 0.0
    %615 = vmatprep.subr.mxu0 0.0
    %616 = vmatpush1.msra.mxu0 0.0
    %617 = vmatprep.subr.mxu0 0.0
    %618 = vmatpush1.msra.mxu0 0.0
    %619 = vmatprep.subr.mxu0 0.0
    %620 = vmatpush1.msra.mxu0 0.0
    %621 = vmatprep.subr.mxu0 0.0
    %622 = vmatpush1.msra.mxu0 0.0
    %623 = vmatprep.subr.mxu0 0.0
    %624 = vmatpush1.msra.mxu0 0.0
    %625 = vmatprep.subr.mxu0 0.0
    %626 = vmatpush1.msra.mxu0 0.0
    %627 = vmatprep.subr.mxu0 0.0
    %628 = vmatpush1.msra.mxu0 0.0
    %629 = vmatprep.subr.mxu0 0.0
    %630 = vmatpush1.msra.mxu0 0.0
    %631 = vmatprep.subr.mxu0 0.0
    %632 = vmatpush1.msra.mxu0 0.0
    %633 = vmatprep.subr.mxu0 0.0
    %634 = vmatpush1.msra.mxu0 0.0
    %635 = vmatprep.subr.mxu0 0.0
    %636 = vmatpush1.msra.mxu0 0.0
    %637 = vmatprep.subr.mxu0 0.0
    %638 = vmatpush1.msra.mxu0 0.0
    %639 = vmatprep.subr.mxu0 0.0
    %640 = vmatpush1.msra.mxu0 0.0
    %641 = vmatprep.subr.mxu0 0.0
    %642 = vmatpush1.msra.mxu0 0.0
    %643 = vmatprep.subr.mxu0 0.0
    %644 = vmatpush1.msra.mxu0 0.0
    %645 = vmatprep.mubr.f32.mxu0 0.0
    %646 = vmatmul.mubr.f32.gmra.mrb[0].mxu0 %v579
    %v647 = vpop.f32.mrb[0].mxu0
    %v648 = vadd.f32 0.0, %v647
    %v649 = vpop.f32.mrb[0].mxu0
    %650 = vdwg.mxu0
    %v651 = vadd.f32 %v648, %v134
    %s652 = scalar_lea.vmem [#allocation5], 24
    %653 = vst [vmem:[%s652] sm:$0xff] %v651
    %s654 = sadd.s32 %s212, 3
    %p655 = scmp.eq.s32.totalorder %s654, 7
    // Predicated region
    $region46: #{tpu_custom_call.1} parent=1 // pred_check
      %p656 = pneg %p655
    $region47: #{tpu_custom_call.1} parent=1 // pred_check_branch
      %658 = sbr.rel (%p656) target = $region49
    $region48: #{tpu_custom_call.1} parent=1 // pred_region
      %660 = vst.msk [vmem:[#allocation7] sm:$0xff] %vm138, %v578
      %662 = vrot.lane.b32.xlu0 %v569, 112
      %v663 = vpop.permute.xlu0 %662
      %665 = vst.msk [vmem:[#allocation9] sm:$0xff] %vm138, %v663
    $region49: #{tpu_custom_call.1} parent=1 // pred_fallthru
      _
    %s666 = scalar_lea.vmem [#allocation4], 32
    %v667 = vld [vmem:[%s666] sm:$0xff]
    %v668 = vadd.f32 %v667, %v648
    %v669 = vtanh.pop %v668
    %v670 = vmul.f32 %v669, 0.5
    %v671 = vadd.f32 %v670, 0.5
    %v672 = vmul.f32 %v671, %v569
    %674 = vrot.lane.b32.xlu0 %v669, 80
    %v675 = vpop.permute.xlu0 %674
    %v677 = vmul.f32 %v671, %v675
    %679 = vrot.lane.b32.xlu0 %v677, 16
    %v680 = vpop.permute.xlu0 %679
    %v682 = vadd.f32 %v672, %v680
    %v683 = vtanh.pop %v682
    %685 = vrot.lane.b32.xlu0 %v683, 16
    %v686 = vpop.permute.xlu0 %685
    %v688 = vmul.f32 %v671, %v686
    %690 = vrot.lane.b32.xlu0 %v688, 96
    %v691 = vpop.permute.xlu0 %690
    %v692 = vsel %vm138, %v691, 0
    %694 = vmatprep.subr.mxu0 0.0
    %695 = vmatpush1.msra.mxu0 %v127
    %696 = vmatprep.subr.mxu0 0.0
    %697 = vmatpush1.msra.mxu0 %v128
    %698 = vmatprep.subr.mxu0 0.0
    %699 = vmatpush1.msra.mxu0 0.0
    %700 = vmatprep.subr.mxu0 0.0
    %701 = vmatpush1.msra.mxu0 0.0
    %702 = vmatprep.subr.mxu0 0.0
    %703 = vmatpush1.msra.mxu0 0.0
    %704 = vmatprep.subr.mxu0 0.0
    %705 = vmatpush1.msra.mxu0 0.0
    %706 = vmatprep.subr.mxu0 0.0
    %707 = vmatpush1.msra.mxu0 0.0
    %708 = vmatprep.subr.mxu0 0.0
    %709 = vmatpush1.msra.mxu0 0.0
    %710 = vmatprep.subr.mxu0 0.0
    %711 = vmatpush1.msra.mxu0 0.0
    %712 = vmatprep.subr.mxu0 0.0
    %713 = vmatpush1.msra.mxu0 0.0
    %714 = vmatprep.subr.mxu0 0.0
    %715 = vmatpush1.msra.mxu0 0.0
    %716 = vmatprep.subr.mxu0 0.0
    %717 = vmatpush1.msra.mxu0 0.0
    %718 = vmatprep.subr.mxu0 0.0
    %719 = vmatpush1.msra.mxu0 0.0
    %720 = vmatprep.subr.mxu0 0.0
    %721 = vmatpush1.msra.mxu0 0.0
    %722 = vmatprep.subr.mxu0 0.0
    %723 = vmatpush1.msra.mxu0 0.0
    %724 = vmatprep.subr.mxu0 0.0
    %725 = vmatpush1.msra.mxu0 0.0
    %726 = vmatprep.subr.mxu0 0.0
    %727 = vmatpush1.msra.mxu0 0.0
    %728 = vmatprep.subr.mxu0 0.0
    %729 = vmatpush1.msra.mxu0 0.0
    %730 = vmatprep.subr.mxu0 0.0
    %731 = vmatpush1.msra.mxu0 0.0
    %732 = vmatprep.subr.mxu0 0.0
    %733 = vmatpush1.msra.mxu0 0.0
    %734 = vmatprep.subr.mxu0 0.0
    %735 = vmatpush1.msra.mxu0 0.0
    %736 = vmatprep.subr.mxu0 0.0
    %737 = vmatpush1.msra.mxu0 0.0
    %738 = vmatprep.subr.mxu0 0.0
    %739 = vmatpush1.msra.mxu0 0.0
    %740 = vmatprep.subr.mxu0 0.0
    %741 = vmatpush1.msra.mxu0 0.0
    %742 = vmatprep.subr.mxu0 0.0
    %743 = vmatpush1.msra.mxu0 0.0
    %744 = vmatprep.subr.mxu0 0.0
    %745 = vmatpush1.msra.mxu0 0.0
    %746 = vmatprep.subr.mxu0 0.0
    %747 = vmatpush1.msra.mxu0 0.0
    %748 = vmatprep.subr.mxu0 0.0
    %749 = vmatpush1.msra.mxu0 0.0
    %750 = vmatprep.subr.mxu0 0.0
    %751 = vmatpush1.msra.mxu0 0.0
    %752 = vmatprep.subr.mxu0 0.0
    %753 = vmatpush1.msra.mxu0 0.0
    %754 = vmatprep.subr.mxu0 0.0
    %755 = vmatpush1.msra.mxu0 0.0
    %756 = vmatprep.subr.mxu0 0.0
    %757 = vmatpush1.msra.mxu0 0.0
    %758 = vmatprep.mubr.f32.mxu0 0.0
    %759 = vmatmul.mubr.f32.gmra.mrb[0].mxu0 %v692
    %v760 = vpop.f32.mrb[0].mxu0
    %v761 = vadd.f32 0.0, %v760
    %v762 = vpop.f32.mrb[0].mxu0
    %763 = vdwg.mxu0
    %v764 = vadd.f32 %v761, %v134
    %s765 = scalar_lea.vmem [#allocation5], 32
    %766 = vst [vmem:[%s765] sm:$0xff] %v764
    %s767 = sadd.s32 %s212, 4
    %p768 = scmp.eq.s32.totalorder %s767, 7
    // Predicated region
    $region50: #{tpu_custom_call.1} parent=1 // pred_check
      %p769 = pneg %p768
    $region51: #{tpu_custom_call.1} parent=1 // pred_check_branch
      %771 = sbr.rel (%p769) target = $region53
    $region52: #{tpu_custom_call.1} parent=1 // pred_region
      %773 = vst.msk [vmem:[#allocation7] sm:$0xff] %vm138, %v691
      %775 = vrot.lane.b32.xlu0 %v682, 112
      %v776 = vpop.permute.xlu0 %775
      %778 = vst.msk [vmem:[#allocation9] sm:$0xff] %vm138, %v776
    $region53: #{tpu_custom_call.1} parent=1 // pred_fallthru
      _
    %s779 = scalar_lea.vmem [#allocation4], 40
    %v780 = vld [vmem:[%s779] sm:$0xff]
    %v781 = vadd.f32 %v780, %v761
    %v782 = vtanh.pop %v781
    %v783 = vmul.f32 %v782, 0.5
    %v784 = vadd.f32 %v783, 0.5
    %v785 = vmul.f32 %v784, %v682
    %787 = vrot.lane.b32.xlu0 %v782, 80
    %v788 = vpop.permute.xlu0 %787
    %v790 = vmul.f32 %v784, %v788
    %792 = vrot.lane.b32.xlu0 %v790, 16
    %v793 = vpop.permute.xlu0 %792
    %v795 = vadd.f32 %v785, %v793
    %v796 = vtanh.pop %v795
    %798 = vrot.lane.b32.xlu0 %v796, 16
    %v799 = vpop.permute.xlu0 %798
    %v801 = vmul.f32 %v784, %v799
    %803 = vrot.lane.b32.xlu0 %v801, 96
    %v804 = vpop.permute.xlu0 %803
    %v805 = vsel %vm138, %v804, 0
    %807 = vmatprep.subr.mxu0 0.0
    %808 = vmatpush1.msra.mxu0 %v127
    %809 = vmatprep.subr.mxu0 0.0
    %810 = vmatpush1.msra.mxu0 %v128
    %811 = vmatprep.subr.mxu0 0.0
    %812 = vmatpush1.msra.mxu0 0.0
    %813 = vmatprep.subr.mxu0 0.0
    %814 = vmatpush1.msra.mxu0 0.0
    %815 = vmatprep.subr.mxu0 0.0
    %816 = vmatpush1.msra.mxu0 0.0
    %817 = vmatprep.subr.mxu0 0.0
    %818 = vmatpush1.msra.mxu0 0.0
    %819 = vmatprep.subr.mxu0 0.0
    %820 = vmatpush1.msra.mxu0 0.0
    %821 = vmatprep.subr.mxu0 0.0
    %822 = vmatpush1.msra.mxu0 0.0
    %823 = vmatprep.subr.mxu0 0.0
    %824 = vmatpush1.msra.mxu0 0.0
    %825 = vmatprep.subr.mxu0 0.0
    %826 = vmatpush1.msra.mxu0 0.0
    %827 = vmatprep.subr.mxu0 0.0
    %828 = vmatpush1.msra.mxu0 0.0
    %829 = vmatprep.subr.mxu0 0.0
    %830 = vmatpush1.msra.mxu0 0.0
    %831 = vmatprep.subr.mxu0 0.0
    %832 = vmatpush1.msra.mxu0 0.0
    %833 = vmatprep.subr.mxu0 0.0
    %834 = vmatpush1.msra.mxu0 0.0
    %835 = vmatprep.subr.mxu0 0.0
    %836 = vmatpush1.msra.mxu0 0.0
    %837 = vmatprep.subr.mxu0 0.0
    %838 = vmatpush1.msra.mxu0 0.0
    %839 = vmatprep.subr.mxu0 0.0
    %840 = vmatpush1.msra.mxu0 0.0
    %841 = vmatprep.subr.mxu0 0.0
    %842 = vmatpush1.msra.mxu0 0.0
    %843 = vmatprep.subr.mxu0 0.0
    %844 = vmatpush1.msra.mxu0 0.0
    %845 = vmatprep.subr.mxu0 0.0
    %846 = vmatpush1.msra.mxu0 0.0
    %847 = vmatprep.subr.mxu0 0.0
    %848 = vmatpush1.msra.mxu0 0.0
    %849 = vmatprep.subr.mxu0 0.0
    %850 = vmatpush1.msra.mxu0 0.0
    %851 = vmatprep.subr.mxu0 0.0
    %852 = vmatpush1.msra.mxu0 0.0
    %853 = vmatprep.subr.mxu0 0.0
    %854 = vmatpush1.msra.mxu0 0.0
    %855 = vmatprep.subr.mxu0 0.0
    %856 = vmatpush1.msra.mxu0 0.0
    %857 = vmatprep.subr.mxu0 0.0
    %858 = vmatpush1.msra.mxu0 0.0
    %859 = vmatprep.subr.mxu0 0.0
    %860 = vmatpush1.msra.mxu0 0.0
    %861 = vmatprep.subr.mxu0 0.0
    %862 = vmatpush1.msra.mxu0 0.0
    %863 = vmatprep.subr.mxu0 0.0
    %864 = vmatpush1.msra.mxu0 0.0
    %865 = vmatprep.subr.mxu0 0.0
    %866 = vmatpush1.msra.mxu0 0.0
    %867 = vmatprep.subr.mxu0 0.0
    %868 = vmatpush1.msra.mxu0 0.0
    %869 = vmatprep.subr.mxu0 0.0
    %870 = vmatpush1.msra.mxu0 0.0
    %871 = vmatprep.mubr.f32.mxu0 0.0
    %872 = vmatmul.mubr.f32.gmra.mrb[0].mxu0 %v805
    %v873 = vpop.f32.mrb[0].mxu0
    %v874 = vadd.f32 0.0, %v873
    %v875 = vpop.f32.mrb[0].mxu0
    %876 = vdwg.mxu0
    %v877 = vadd.f32 %v874, %v134
    %s878 = scalar_lea.vmem [#allocation5], 40
    %879 = vst [vmem:[%s878] sm:$0xff] %v877
    %s880 = sadd.s32 %s212, 5
    %p881 = scmp.eq.s32.totalorder %s880, 7
    // Predicated region
    $region54: #{tpu_custom_call.1} parent=1 // pred_check
      %p882 = pneg %p881
    $region55: #{tpu_custom_call.1} parent=1 // pred_check_branch
      %884 = sbr.rel (%p882) target = $region57
    $region56: #{tpu_custom_call.1} parent=1 // pred_region
      %886 = vst.msk [vmem:[#allocation7] sm:$0xff] %vm138, %v804
      %888 = vrot.lane.b32.xlu0 %v795, 112
      %v889 = vpop.permute.xlu0 %888
      %891 = vst.msk [vmem:[#allocation9] sm:$0xff] %vm138, %v889
    $region57: #{tpu_custom_call.1} parent=1 // pred_fallthru
      _
    %s892 = scalar_lea.vmem [#allocation4], 48
    %v893 = vld [vmem:[%s892] sm:$0xff]
    %v894 = vadd.f32 %v893, %v874
    %v895 = vtanh.pop %v894
    %v896 = vmul.f32 %v895, 0.5
    %v897 = vadd.f32 %v896, 0.5
    %v898 = vmul.f32 %v897, %v795
    %900 = vrot.lane.b32.xlu0 %v895, 80
    %v901 = vpop.permute.xlu0 %900
    %v903 = vmul.f32 %v897, %v901
    %905 = vrot.lane.b32.xlu0 %v903, 16
    %v906 = vpop.permute.xlu0 %905
    %v908 = vadd.f32 %v898, %v906
    %v909 = vtanh.pop %v908
    %911 = vrot.lane.b32.xlu0 %v909, 16
    %v912 = vpop.permute.xlu0 %911
    %v914 = vmul.f32 %v897, %v912
    %916 = vrot.lane.b32.xlu0 %v914, 96
    %v917 = vpop.permute.xlu0 %916
    %v918 = vsel %vm138, %v917, 0
    %920 = vmatprep.subr.mxu0 0.0
    %921 = vmatpush1.msra.mxu0 %v127
    %922 = vmatprep.subr.mxu0 0.0
    %923 = vmatpush1.msra.mxu0 %v128
    %924 = vmatprep.subr.mxu0 0.0
    %925 = vmatpush1.msra.mxu0 0.0
    %926 = vmatprep.subr.mxu0 0.0
    %927 = vmatpush1.msra.mxu0 0.0
    %928 = vmatprep.subr.mxu0 0.0
    %929 = vmatpush1.msra.mxu0 0.0
    %930 = vmatprep.subr.mxu0 0.0
    %931 = vmatpush1.msra.mxu0 0.0
    %932 = vmatprep.subr.mxu0 0.0
    %933 = vmatpush1.msra.mxu0 0.0
    %934 = vmatprep.subr.mxu0 0.0
    %935 = vmatpush1.msra.mxu0 0.0
    %936 = vmatprep.subr.mxu0 0.0
    %937 = vmatpush1.msra.mxu0 0.0
    %938 = vmatprep.subr.mxu0 0.0
    %939 = vmatpush1.msra.mxu0 0.0
    %940 = vmatprep.subr.mxu0 0.0
    %941 = vmatpush1.msra.mxu0 0.0
    %942 = vmatprep.subr.mxu0 0.0
    %943 = vmatpush1.msra.mxu0 0.0
    %944 = vmatprep.subr.mxu0 0.0
    %945 = vmatpush1.msra.mxu0 0.0
    %946 = vmatprep.subr.mxu0 0.0
    %947 = vmatpush1.msra.mxu0 0.0
    %948 = vmatprep.subr.mxu0 0.0
    %949 = vmatpush1.msra.mxu0 0.0
    %950 = vmatprep.subr.mxu0 0.0
    %951 = vmatpush1.msra.mxu0 0.0
    %952 = vmatprep.subr.mxu0 0.0
    %953 = vmatpush1.msra.mxu0 0.0
    %954 = vmatprep.subr.mxu0 0.0
    %955 = vmatpush1.msra.mxu0 0.0
    %956 = vmatprep.subr.mxu0 0.0
    %957 = vmatpush1.msra.mxu0 0.0
    %958 = vmatprep.subr.mxu0 0.0
    %959 = vmatpush1.msra.mxu0 0.0
    %960 = vmatprep.subr.mxu0 0.0
    %961 = vmatpush1.msra.mxu0 0.0
    %962 = vmatprep.subr.mxu0 0.0
    %963 = vmatpush1.msra.mxu0 0.0
    %964 = vmatprep.subr.mxu0 0.0
    %965 = vmatpush1.msra.mxu0 0.0
    %966 = vmatprep.subr.mxu0 0.0
    %967 = vmatpush1.msra.mxu0 0.0
    %968 = vmatprep.subr.mxu0 0.0
    %969 = vmatpush1.msra.mxu0 0.0
    %970 = vmatprep.subr.mxu0 0.0
    %971 = vmatpush1.msra.mxu0 0.0
    %972 = vmatprep.subr.mxu0 0.0
    %973 = vmatpush1.msra.mxu0 0.0
    %974 = vmatprep.subr.mxu0 0.0
    %975 = vmatpush1.msra.mxu0 0.0
    %976 = vmatprep.subr.mxu0 0.0
    %977 = vmatpush1.msra.mxu0 0.0
    %978 = vmatprep.subr.mxu0 0.0
    %979 = vmatpush1.msra.mxu0 0.0
    %980 = vmatprep.subr.mxu0 0.0
    %981 = vmatpush1.msra.mxu0 0.0
    %982 = vmatprep.subr.mxu0 0.0
    %983 = vmatpush1.msra.mxu0 0.0
    %984 = vmatprep.mubr.f32.mxu0 0.0
    %985 = vmatmul.mubr.f32.gmra.mrb[0].mxu0 %v918
    %v986 = vpop.f32.mrb[0].mxu0
    %v987 = vadd.f32 0.0, %v986
    %v988 = vpop.f32.mrb[0].mxu0
    %989 = vdwg.mxu0
    %v990 = vadd.f32 %v987, %v134
    %s991 = scalar_lea.vmem [#allocation5], 48
    %992 = vst [vmem:[%s991] sm:$0xff] %v990
    %s993 = sadd.s32 %s212, 6
    %p994 = scmp.eq.s32.totalorder %s993, 7
    // Predicated region
    $region58: #{tpu_custom_call.1} parent=1 // pred_check
      %p995 = pneg %p994
    $region59: #{tpu_custom_call.1} parent=1 // pred_check_branch
      %997 = sbr.rel (%p995) target = $region61
    $region60: #{tpu_custom_call.1} parent=1 // pred_region
      %999 = vst.msk [vmem:[#allocation7] sm:$0xff] %vm138, %v917
      %1001 = vrot.lane.b32.xlu0 %v908, 112
      %v1002 = vpop.permute.xlu0 %1001
      %1004 = vst.msk [vmem:[#allocation9] sm:$0xff] %vm138, %v1002
    $region61: #{tpu_custom_call.1} parent=1 // pred_fallthru
      _
    %s1005 = scalar_lea.vmem [#allocation4], 56
    %v1006 = vld [vmem:[%s1005] sm:$0xff]
    %v1007 = vadd.f32 %v1006, %v987
    %v1008 = vtanh.pop %v1007
    %v1009 = vmul.f32 %v1008, 0.5
    %v1010 = vadd.f32 %v1009, 0.5
    %v1011 = vmul.f32 %v1010, %v908
    %1013 = vrot.lane.b32.xlu0 %v1008, 80
    %v1014 = vpop.permute.xlu0 %1013
    %v1016 = vmul.f32 %v1010, %v1014
    %1018 = vrot.lane.b32.xlu0 %v1016, 16
    %v1019 = vpop.permute.xlu0 %1018
    %v1021 = vadd.f32 %v1011, %v1019
    %v1022 = vtanh.pop %v1021
    %1024 = vrot.lane.b32.xlu0 %v1022, 16
    %v1025 = vpop.permute.xlu0 %1024
    %v1027 = vmul.f32 %v1010, %v1025
    %1029 = vrot.lane.b32.xlu0 %v1027, 96
    %v1030 = vpop.permute.xlu0 %1029
    %v1031 = vsel %vm138, %v1030, 0
    %1033 = vmatprep.subr.mxu0 0.0
    %1034 = vmatpush1.msra.mxu0 %v127
    %1035 = vmatprep.subr.mxu0 0.0
    %1036 = vmatpush1.msra.mxu0 %v128
    %1037 = vmatprep.subr.mxu0 0.0
    %1038 = vmatpush1.msra.mxu0 0.0
    %1039 = vmatprep.subr.mxu0 0.0
    %1040 = vmatpush1.msra.mxu0 0.0
    %1041 = vmatprep.subr.mxu0 0.0
    %1042 = vmatpush1.msra.mxu0 0.0
    %1043 = vmatprep.subr.mxu0 0.0
    %1044 = vmatpush1.msra.mxu0 0.0
    %1045 = vmatprep.subr.mxu0 0.0
    %1046 = vmatpush1.msra.mxu0 0.0
    %1047 = vmatprep.subr.mxu0 0.0
    %1048 = vmatpush1.msra.mxu0 0.0
    %1049 = vmatprep.subr.mxu0 0.0
    %1050 = vmatpush1.msra.mxu0 0.0
    %1051 = vmatprep.subr.mxu0 0.0
    %1052 = vmatpush1.msra.mxu0 0.0
    %1053 = vmatprep.subr.mxu0 0.0
    %1054 = vmatpush1.msra.mxu0 0.0
    %1055 = vmatprep.subr.mxu0 0.0
    %1056 = vmatpush1.msra.mxu0 0.0
    %1057 = vmatprep.subr.mxu0 0.0
    %1058 = vmatpush1.msra.mxu0 0.0
    %1059 = vmatprep.subr.mxu0 0.0
    %1060 = vmatpush1.msra.mxu0 0.0
    %1061 = vmatprep.subr.mxu0 0.0
    %1062 = vmatpush1.msra.mxu0 0.0
    %1063 = vmatprep.subr.mxu0 0.0
    %1064 = vmatpush1.msra.mxu0 0.0
    %1065 = vmatprep.subr.mxu0 0.0
    %1066 = vmatpush1.msra.mxu0 0.0
    %1067 = vmatprep.subr.mxu0 0.0
    %1068 = vmatpush1.msra.mxu0 0.0
    %1069 = vmatprep.subr.mxu0 0.0
    %1070 = vmatpush1.msra.mxu0 0.0
    %1071 = vmatprep.subr.mxu0 0.0
    %1072 = vmatpush1.msra.mxu0 0.0
    %1073 = vmatprep.subr.mxu0 0.0
    %1074 = vmatpush1.msra.mxu0 0.0
    %1075 = vmatprep.subr.mxu0 0.0
    %1076 = vmatpush1.msra.mxu0 0.0
    %1077 = vmatprep.subr.mxu0 0.0
    %1078 = vmatpush1.msra.mxu0 0.0
    %1079 = vmatprep.subr.mxu0 0.0
    %1080 = vmatpush1.msra.mxu0 0.0
    %1081 = vmatprep.subr.mxu0 0.0
    %1082 = vmatpush1.msra.mxu0 0.0
    %1083 = vmatprep.subr.mxu0 0.0
    %1084 = vmatpush1.msra.mxu0 0.0
    %1085 = vmatprep.subr.mxu0 0.0
    %1086 = vmatpush1.msra.mxu0 0.0
    %1087 = vmatprep.subr.mxu0 0.0
    %1088 = vmatpush1.msra.mxu0 0.0
    %1089 = vmatprep.subr.mxu0 0.0
    %1090 = vmatpush1.msra.mxu0 0.0
    %1091 = vmatprep.subr.mxu0 0.0
    %1092 = vmatpush1.msra.mxu0 0.0
    %1093 = vmatprep.subr.mxu0 0.0
    %1094 = vmatpush1.msra.mxu0 0.0
    %1095 = vmatprep.subr.mxu0 0.0
    %1096 = vmatpush1.msra.mxu0 0.0
    %1097 = vmatprep.mubr.f32.mxu0 0.0
    %1098 = vmatmul.mubr.f32.gmra.mrb[0].mxu0 %v1031
    %v1099 = vpop.f32.mrb[0].mxu0
    %v1100 = vadd.f32 %v134, %v1099
    %v1101 = vpop.f32.mrb[0].mxu0
    %1102 = vdwg.mxu0
    %s1103 = scalar_lea.vmem [#allocation5], 56
    %1104 = vst [vmem:[%s1103] sm:$0xff] %v1100
    %s1105 = sadd.s32 %s212, 7
    %p1106 = scmp.eq.s32.totalorder %s1105, 7
    // Predicated region
    $region62: #{tpu_custom_call.1} parent=1 // pred_check
      %p1107 = pneg %p1106
    $region63: #{tpu_custom_call.1} parent=1 // pred_check_branch
      %1109 = sbr.rel (%p1107) target = $region65
    $region64: #{tpu_custom_call.1} parent=1 // pred_region
      %1111 = vst.msk [vmem:[#allocation7] sm:$0xff] %vm138, %v1030
      %1113 = vrot.lane.b32.xlu0 %v1021, 112
      %v1114 = vpop.permute.xlu0 %1113
      %1116 = vst.msk [vmem:[#allocation9] sm:$0xff] %vm138, %v1114
    $region65: #{tpu_custom_call.1} parent=1 // pred_fallthru
      _
    %1118 = vst.msk [vmem:[#allocation2] sm:$0xff] %vm138, %v1030
    %1120 = vrot.lane.b32.xlu0 %v1021, 112
    %v1121 = vpop.permute.xlu0 %1120
    %1123 = vst.msk [vmem:[#allocation3] sm:$0xff] %vm138, %v1121
    // Predicated region
    $region66: #{tpu_custom_call.1} parent=1 // pred_check
      _
    $region67: #{tpu_custom_call.1} parent=1 // pred_check_branch
      %1125 = sbr.rel (0) target = $region69
    $region68: #{tpu_custom_call.1} parent=1 // pred_region
      %s1127 = ssub.s32 1024, 1024
      %1128 = vsyncadd [#allocation6], %s1127
      %s1129 = sshll.u32 [#allocation5], 4
      %s1130 = int_to_ptr.vmem [resolvable:$true] %s1129
      %1135 = dma.vmem_to_hbm [thread:$0]  %s1130, 1024, %s7, [#allocation6], 128, 128, 8
    $region69: #{tpu_custom_call.1} parent=1 // pred_fallthru
      _
    // Predicated region
    $region70: #{tpu_custom_call.1} parent=1 // pred_check
      _
    $region71: #{tpu_custom_call.1} parent=1 // pred_check_branch
      %1137 = sbr.rel (0) target = $region73
    $region72: #{tpu_custom_call.1} parent=1 // pred_region
      %s1139 = ssub.s32 128, 128
      %1140 = vsyncadd [#allocation8], %s1139
      %s1142 = sshll.u32 [#allocation7], 4
      %s1143 = int_to_ptr.vmem [resolvable:$true] %s1142
      %1145 = dma.vmem_to_hbm [thread:$0]  %s1143, 128, %s8, [#allocation8]
    $region73: #{tpu_custom_call.1} parent=1 // pred_fallthru
      _
    // Predicated region
    $region74: #{tpu_custom_call.1} parent=1 // pred_check
      _
    $region75: #{tpu_custom_call.1} parent=1 // pred_check_branch
      %1147 = sbr.rel (0) target = $region77
    $region76: #{tpu_custom_call.1} parent=1 // pred_region
      %s1149 = ssub.s32 128, 128
      %1150 = vsyncadd [#allocation8], %s1149
      %s1152 = sshll.u32 [#allocation9], 4
      %s1153 = int_to_ptr.vmem [resolvable:$true] %s1152
      %1155 = dma.vmem_to_hbm [thread:$0]  %s1153, 128, %s9, [#allocation8]
    $region77: #{tpu_custom_call.1} parent=1 // pred_fallthru
      _
    // Predicated region
    $region78: #{tpu_custom_call.1} parent=1 // pred_check
      _
    $region79: #{tpu_custom_call.1} parent=1 // pred_check_branch
      %1157 = sbr.rel (0) target = $region81
    $region80: #{tpu_custom_call.1} parent=1 // pred_region
      %1158 = dma.done [#allocation6], 1024
    $region81: #{tpu_custom_call.1} parent=1 // pred_fallthru
      _
    // Predicated region
    $region82: #{tpu_custom_call.1} parent=1 // pred_check
      _
    $region83: #{tpu_custom_call.1} parent=1 // pred_check_branch
      %1160 = sbr.rel (0) target = $region85
    $region84: #{tpu_custom_call.1} parent=1 // pred_region
      %1161 = dma.done [#allocation8], 128
    $region85: #{tpu_custom_call.1} parent=1 // pred_fallthru
      _
    // Predicated region
    $region86: #{tpu_custom_call.1} parent=1 // pred_check
      _
    $region87: #{tpu_custom_call.1} parent=1 // pred_check_branch
      %1163 = sbr.rel (0) target = $region89
    $region88: #{tpu_custom_call.1} parent=1 // pred_region
      %1164 = dma.done [#allocation8], 128
    $region89: #{tpu_custom_call.1} parent=1 // pred_fallthru
      _
    %1165 = vsyncpa [#allocation6], 1
    %1166 = vsyncpa [#allocation8], 1

</llo_original>
